<compile_context>
chip_gen: v7x
topology: tpu7x:2x2x1
jax: 0.10.0
libtpu: 0.0.40
codegen_flags: <defaults>
</compile_context>

<pallas_src>
import functools

import jax
import jax.numpy as jnp
from jax import lax
from jax.experimental import pallas as pl
from jax.experimental.pallas import tpu as pltpu

EPS = 1e-5


def _cdiv(a, b):
    return -(-a // b)


def _round_up(a, b):
    return _cdiv(a, b) * b


def _make_conv_stats_kernel(*, ksize, stride, tile_h, h_out, w_out,
                            c_in, c_out_pad, bh, halo_bh):
    tm = tile_h * w_out
    h_span = (tile_h - 1) * stride + 1
    w_span = (w_out - 1) * stride + 1

    def kernel(x_ref, halo_ref, w_ref, conv_ref, stats_ref, band_ref):
        # x_ref:    (1, bh,      Wp, Cin)  main input row band (f32)
        # halo_ref: (1, halo_bh, Wp, Cin)  first rows of the next band (f32)
        # w_ref:    (K*K, Cin, Cout_pad)   per-tap weights (bf16)
        # conv_ref: (1, TH*Wo, Cout_pad)   f32 conv tile (lane-dense)
        # stats_ref:(1, 1, 8, Cout_pad)    rows 0/1 = per-tile channel sum / sum-of-sq
        # band_ref: (bh+halo_bh, Wp, Cin)  VMEM scratch: haloed band

        # Assemble the haloed band in VMEM.
        band_ref[0:bh, :, :] = x_ref[0, :, :, :]
        band_ref[bh:bh + halo_bh, :, :] = halo_ref[0, :, :, :]

        # K*K accumulated matmuls: bf16 MXU operands, f32 accumulation.
        acc = jnp.zeros((tm, c_out_pad), jnp.float32)
        for kh in range(ksize):
            for kw in range(ksize):
                if stride == 1:
                    tap = band_ref[kh:kh + tile_h, kw:kw + w_out, :]
                else:
                    # NOTE: stride > 1 uses strided ref slices.
                    tap = band_ref[kh:kh + h_span:stride, kw:kw + w_span:stride, :]
                tap = tap.reshape(tm, c_in).astype(jnp.bfloat16)
                acc = acc + jnp.dot(tap, w_ref[kh * ksize + kw, :, :],
                                    preferred_element_type=jnp.float32)

        conv_ref[0, :, :] = acc.astype(conv_ref.dtype)

        # Per-tile BatchNorm partials (f32). Mask rows past h_out for a partial last tile.
        if h_out % tile_h == 0:
            acc_m = acc
        else:
            i = pl.program_id(1)
            row = lax.broadcasted_iota(jnp.int32, (tm, 1), 0) // w_out
            acc_m = jnp.where(row < (h_out - i * tile_h), acc, 0.0)
        s1 = jnp.sum(acc_m, axis=0, keepdims=True)
        s2 = jnp.sum(acc_m * acc_m, axis=0, keepdims=True)
        stats_ref[0, 0, :, :] = jnp.concatenate(
            [s1, s2, jnp.zeros((6, c_out_pad), jnp.float32)], axis=0)

    return kernel


def _bn_silu_kernel(conv_ref, scale_ref, shift_ref, o_ref):
    # conv_ref: (1, TM, Cout_pad) f32; scale/shift: (1, Cout_pad) f32.
    y = conv_ref[0, :, :] * scale_ref[:, :] + shift_ref[:, :]
    o_ref[0, :, :] = (y * jax.nn.sigmoid(y)).astype(o_ref.dtype)


@functools.partial(jax.jit, static_argnames=("ksize", "stride", "tile_rows"))
def base_conv_forward(x, weight, gamma, beta, *, ksize, stride, tile_rows=8):
    """x: (N, Cin, H, W) NCHW; weight: (Cout, Cin, K, K) -> (N, Cout, Ho, Wo) NCHW."""
    n, c_in, h, w = x.shape
    c_out = weight.shape[0]
    k, s = ksize, stride
    pad = (k - 1) // 2
    h_out = (h + 2 * pad - k) // s + 1
    w_out = (w + 2 * pad - k) // s + 1

    c_out_pad = _round_up(c_out, 128)            # lane-dense stores / MXU columns
    halo_bh = 8 * _cdiv(max(k - s, 1), 8)        # halo rows fetched from the next band
    tile_h = _round_up(min(max(tile_rows, 1), h_out), halo_bh)  # output rows per step
    n_h = _cdiv(h_out, tile_h)
    bh = tile_h * s                              # input rows per main band
    rh = bh // halo_bh
    tm = tile_h * w_out

    # ---- one-pass layout prep (kept NCHW at the interface for PyTorch parity) ----
    x_nhwc = jnp.transpose(x, (0, 2, 3, 1)).astype(jnp.float32)
    w_pad_full = w + 2 * pad
    h_alloc = max(n_h * bh + halo_bh, h + 2 * pad)
    x_padded = jnp.pad(
        x_nhwc, ((0, 0), (pad, h_alloc - h - pad), (pad, w_pad_full - w - pad), (0, 0)))

    # (Cout, Cin, K, K) -> (K*K, Cin, Cout_pad), bf16 MXU operands.
    w_taps = jnp.transpose(weight, (2, 3, 1, 0)).reshape(k * k, c_in, c_out)
    w_taps = jnp.pad(w_taps, ((0, 0), (0, 0), (0, c_out_pad - c_out))).astype(jnp.bfloat16)

    conv_kernel = _make_conv_stats_kernel(
        ksize=k, stride=s, tile_h=tile_h, h_out=h_out, w_out=w_out,
        c_in=c_in, c_out_pad=c_out_pad, bh=bh, halo_bh=halo_bh)

    # Rough VMEM budget (double-buffered blocks + scratch) so v7x's 64 MiB is respected.
    est = ((bh + halo_bh) * w_pad_full * c_in * 4          # band scratch
           + 2 * bh * w_pad_full * c_in * 4                # main band (x2 buffers)
           + 2 * halo_bh * w_pad_full * c_in * 4           # halo band
           + 2 * k * k * c_in * c_out_pad * 2              # weights
           + 2 * tm * c_out_pad * 4                        # conv out tile
           + 2 * 8 * c_out_pad * 4                         # stats tile
           + tm * c_out_pad * 4)                           # accumulator
    vmem_limit = int(min(max(2 * est, 32 * 2 ** 20), 60 * 2 ** 20))

    # ---------------- pass 1: conv + per-tile BN partials ----------------
    conv_flat, stats = pl.pallas_call(
        conv_kernel,
        grid=(n, n_h),
        in_specs=[
            pl.BlockSpec((1, bh, w_pad_full, c_in), lambda b, i: (b, i, 0, 0)),
            pl.BlockSpec((1, halo_bh, w_pad_full, c_in),
                         lambda b, i: (b, (i + 1) * rh, 0, 0)),
            pl.BlockSpec((k * k, c_in, c_out_pad), lambda b, i: (0, 0, 0)),
        ],
        out_specs=[
            pl.BlockSpec((1, tm, c_out_pad), lambda b, i: (b * n_h + i, 0, 0)),
            pl.BlockSpec((1, 1, 8, c_out_pad), lambda b, i: (b, i, 0, 0)),
        ],
        out_shape=[
            jax.ShapeDtypeStruct((n * n_h, tm, c_out_pad), jnp.float32),
            jax.ShapeDtypeStruct((n, n_h, 8, c_out_pad), jnp.float32),
        ],
        scratch_shapes=[pltpu.VMEM((bh + halo_bh, w_pad_full, c_in), jnp.float32)],
        compiler_params=pltpu.CompilerParams(
            dimension_semantics=("parallel", "parallel"),
            vmem_limit_bytes=vmem_limit),
        cost_estimate=pl.CostEstimate(
            flops=2 * n * n_h * tm * k * k * c_in * c_out_pad,
            transcendentals=0,
            bytes_accessed=(n * h_alloc * w_pad_full * c_in * 4
                            + n * n_h * tm * c_out_pad * 4
                            + k * k * c_in * c_out_pad * 2)),
    )(x_padded, x_padded, w_taps)

    # ---- tiny global reduction of the partials; fold BN affine into scale/shift ----
    # f32 accumulators throughout to avoid E[x^2]-E[x]^2 cancellation issues.
    count = float(n * h_out * w_out)
    totals = jnp.sum(stats, axis=(0, 1))                       # (8, Cout_pad)
    mean = totals[0:1] / count                                 # (1, Cout_pad)
    var = jnp.maximum(totals[1:2] / count - mean * mean, 0.0)  # biased variance
    gamma_p = jnp.pad(gamma.astype(jnp.float32), (0, c_out_pad - c_out)).reshape(1, c_out_pad)
    beta_p = jnp.pad(beta.astype(jnp.float32), (0, c_out_pad - c_out)).reshape(1, c_out_pad)
    scale = gamma_p * lax.rsqrt(var + EPS)
    shift = beta_p - mean * scale

    # ---------------- pass 2: normalize + SiLU (lane-dense tiles) ----------------
    out_flat = pl.pallas_call(
        _bn_silu_kernel,
        grid=(n * n_h,),
        in_specs=[
            pl.BlockSpec((1, tm, c_out_pad), lambda t: (t, 0, 0)),
            pl.BlockSpec((1, c_out_pad), lambda t: (0, 0)),
            pl.BlockSpec((1, c_out_pad), lambda t: (0, 0)),
        ],
        out_specs=pl.BlockSpec((1, tm, c_out_pad), lambda t: (t, 0, 0)),
        out_shape=jax.ShapeDtypeStruct((n * n_h, tm, c_out_pad), x.dtype),
        compiler_params=pltpu.CompilerParams(
            dimension_semantics=("parallel",),
            vmem_limit_bytes=vmem_limit),
        cost_estimate=pl.CostEstimate(
            flops=4 * n * n_h * tm * c_out_pad,
            transcendentals=n * n_h * tm * c_out_pad,
            bytes_accessed=2 * n * n_h * tm * c_out_pad * 4),
    )(conv_flat, scale, shift)

    # (N*n_h, TH*Wo, Cout_pad) -> (N, Ho, Wo, Cout) -> NCHW
    out = out_flat.reshape(n, n_h * tile_h, w_out, c_out_pad)[:, :h_out, :, :c_out]
    return jnp.transpose(out, (0, 3, 1, 2))


def _reference(x, weight, gamma, beta, *, ksize, stride):
    # Same compute recipe as the kernel: bf16 conv operands, f32 accumulation,
    # training-mode (biased) BatchNorm stats, SiLU.
    pad = (ksize - 1) // 2
    conv = jax.lax.conv_general_dilated(
        x.astype(jnp.bfloat16), weight.astype(jnp.bfloat16),
        window_strides=(stride, stride),
        padding=((pad, pad), (pad, pad)),
        dimension_numbers=("NCHW", "OIHW", "NCHW"),
        preferred_element_type=jnp.float32)
    mean = jnp.mean(conv, axis=(0, 2, 3), keepdims=True)
    var = jnp.mean((conv - mean) ** 2, axis=(0, 2, 3), keepdims=True)
    y = (conv - mean) * jax.lax.rsqrt(var + EPS)
    y = y * gamma.reshape(1, -1, 1, 1) + beta.reshape(1, -1, 1, 1)
    return y * jax.nn.sigmoid(y)


if __name__ == "__main__":
    # BaseConv(in_channels=4, out_channels=8, ksize=3, stride=1)
    N, C_IN, H, W = 2, 4, 16, 16
    C_OUT, KSIZE, STRIDE = 8, 3, 1

    key = jax.random.PRNGKey(0)
    kx, kw, kg, kb = jax.random.split(key, 4)
    x = jax.random.normal(kx, (N, C_IN, H, W), dtype=jnp.float32)
    weight = jax.random.normal(kw, (C_OUT, C_IN, KSIZE, KSIZE), dtype=jnp.float32) * 0.1
    gamma = 1.0 + 0.1 * jax.random.normal(kg, (C_OUT,), dtype=jnp.float32)
    beta = 0.1 * jax.random.normal(kb, (C_OUT,), dtype=jnp.float32)

    out = base_conv_forward(x, weight, gamma, beta,
                            ksize=KSIZE, stride=STRIDE, tile_rows=8)
    out = jax.block_until_ready(out)

    ref = _reference(x, weight, gamma, beta, ksize=KSIZE, stride=STRIDE)
    assert out.shape == (N, C_OUT, H, W)
    max_err = float(jnp.max(jnp.abs(out - ref)))
    assert jnp.allclose(out, ref, atol=2e-3, rtol=2e-3), max_err

    print("KERNEL_OK")
</pallas_src>

<mosaic_0001>
module attributes {stable_mosaic.version = 11 : i64} {
  func.func @kernel(%arg0: i32, %arg1: i32, %arg2: memref<1x8x18x4xf32, #tpu.memory_space<vmem>>, %arg3: memref<1x8x18x4xf32, #tpu.memory_space<vmem>>, %arg4: memref<9x4x128xbf16, #tpu.memory_space<vmem>>, %arg5: memref<1x128x128xf32, #tpu.memory_space<vmem>>, %arg6: memref<1x1x8x128xf32, #tpu.memory_space<vmem>>, %arg7: memref<16x18x4xf32, #tpu.memory_space<vmem>>) attributes {dimension_semantics = [#tpu.dimension_semantics<parallel>, #tpu.dimension_semantics<parallel>], iteration_bounds = array<i64: 2, 2>, scalar_prefetch = 0 : i64, scratch_operands = 1 : i64, tpu.core_type = #tpu.core_type<tc>, window_params = [{transform_indices = @transform_0, window_bounds = array<i64: 1, 8, 18, 4>}, {transform_indices = @transform_1, window_bounds = array<i64: 1, 8, 18, 4>}, {pipeline_mode = #tpu.pipeline_mode<synchronous>, transform_indices = @transform_2, window_bounds = array<i64: 9, 4, 128>}, {transform_indices = @transform_3, window_bounds = array<i64: 1, 128, 128>}, {transform_indices = @transform_4, window_bounds = array<i64: 1, 1, 8, 128>}]} {
    %c0 = arith.constant 0 : index
    %c0_0 = arith.constant 0 : index
    %c0_1 = arith.constant 0 : index
    %c0_2 = arith.constant 0 : index
    %0 = vector.load %arg2[%c0, %c0_0, %c0_1, %c0_2] : memref<1x8x18x4xf32, #tpu.memory_space<vmem>>, vector<1x8x18x4xf32>
    %1 = vector.shape_cast %0 : vector<1x8x18x4xf32> to vector<8x18x4xf32>
    %c0_3 = arith.constant 0 : index
    %c0_4 = arith.constant 0 : index
    %c0_5 = arith.constant 0 : index
    %2 = vector.load %arg7[%c0_3, %c0_4, %c0_5] : memref<16x18x4xf32, #tpu.memory_space<vmem>>, vector<8x18x4xf32>
    tpu.vector_store %arg7[%c0_3, %c0_4, %c0_5], %1 {strides = array<i32>} : memref<16x18x4xf32, #tpu.memory_space<vmem>>, vector<8x18x4xf32>,
    %c0_6 = arith.constant 0 : index
    %c0_7 = arith.constant 0 : index
    %c0_8 = arith.constant 0 : index
    %c0_9 = arith.constant 0 : index
    %3 = vector.load %arg3[%c0_6, %c0_7, %c0_8, %c0_9] : memref<1x8x18x4xf32, #tpu.memory_space<vmem>>, vector<1x8x18x4xf32>
    %4 = vector.shape_cast %3 : vector<1x8x18x4xf32> to vector<8x18x4xf32>
    %c8 = arith.constant 8 : index
    %c0_10 = arith.constant 0 : index
    %c0_11 = arith.constant 0 : index
    %5 = vector.load %arg7[%c8, %c0_10, %c0_11] : memref<16x18x4xf32, #tpu.memory_space<vmem>>, vector<8x18x4xf32>
    tpu.vector_store %arg7[%c8, %c0_10, %c0_11], %4 {strides = array<i32>} : memref<16x18x4xf32, #tpu.memory_space<vmem>>, vector<8x18x4xf32>,
    %cst = arith.constant 0.000000e+00 : f32
    %6 = vector.broadcast %cst : f32 to vector<128x128xf32>
    %c0_12 = arith.constant 0 : index
    %c0_13 = arith.constant 0 : index
    %c0_14 = arith.constant 0 : index
    %7 = vector.load %arg7[%c0_12, %c0_13, %c0_14] : memref<16x18x4xf32, #tpu.memory_space<vmem>>, vector<8x16x4xf32>
    %8 = vector.shape_cast %7 : vector<8x16x4xf32> to vector<128x4xf32>
    %9 = arith.truncf %8 : vector<128x4xf32> to vector<128x4xbf16>
    %c0_15 = arith.constant 0 : index
    %c0_16 = arith.constant 0 : index
    %c0_17 = arith.constant 0 : index
    %10 = vector.load %arg4[%c0_15, %c0_16, %c0_17] : memref<9x4x128xbf16, #tpu.memory_space<vmem>>, vector<1x4x128xbf16>
    %11 = vector.shape_cast %10 : vector<1x4x128xbf16> to vector<4x128xbf16>
    %cst_18 = arith.constant dense<0.000000e+00> : vector<128x128xf32>
    %12 = tpu.matmul %9, %11, %cst_18 {dimension_numbers = #tpu.dot_dimension_numbers<[1], [0], [0], [1], [0, 0, 1, 1], [], []>} : vector<128x4xbf16>, vector<4x128xbf16>, vector<128x128xf32> -> vector<128x128xf32>
    %13 = arith.addf %6, %12 : vector<128x128xf32>
    %c0_19 = arith.constant 0 : index
    %c1 = arith.constant 1 : index
    %c0_20 = arith.constant 0 : index
    %14 = vector.load %arg7[%c0_19, %c1, %c0_20] : memref<16x18x4xf32, #tpu.memory_space<vmem>>, vector<8x16x4xf32>
    %15 = vector.shape_cast %14 : vector<8x16x4xf32> to vector<128x4xf32>
    %16 = arith.truncf %15 : vector<128x4xf32> to vector<128x4xbf16>
    %c1_21 = arith.constant 1 : index
    %c0_22 = arith.constant 0 : index
    %c0_23 = arith.constant 0 : index
    %17 = vector.load %arg4[%c1_21, %c0_22, %c0_23] : memref<9x4x128xbf16, #tpu.memory_space<vmem>>, vector<1x4x128xbf16>
    %18 = vector.shape_cast %17 : vector<1x4x128xbf16> to vector<4x128xbf16>
    %cst_24 = arith.constant dense<0.000000e+00> : vector<128x128xf32>
    %19 = tpu.matmul %16, %18, %cst_24 {dimension_numbers = #tpu.dot_dimension_numbers<[1], [0], [0], [1], [0, 0, 1, 1], [], []>} : vector<128x4xbf16>, vector<4x128xbf16>, vector<128x128xf32> -> vector<128x128xf32>
    %20 = arith.addf %13, %19 : vector<128x128xf32>
    %c0_25 = arith.constant 0 : index
    %c2 = arith.constant 2 : index
    %c0_26 = arith.constant 0 : index
    %21 = vector.load %arg7[%c0_25, %c2, %c0_26] : memref<16x18x4xf32, #tpu.memory_space<vmem>>, vector<8x16x4xf32>
    %22 = vector.shape_cast %21 : vector<8x16x4xf32> to vector<128x4xf32>
    %23 = arith.truncf %22 : vector<128x4xf32> to vector<128x4xbf16>
    %c2_27 = arith.constant 2 : index
    %c0_28 = arith.constant 0 : index
    %c0_29 = arith.constant 0 : index
    %24 = vector.load %arg4[%c2_27, %c0_28, %c0_29] : memref<9x4x128xbf16, #tpu.memory_space<vmem>>, vector<1x4x128xbf16>
    %25 = vector.shape_cast %24 : vector<1x4x128xbf16> to vector<4x128xbf16>
    %cst_30 = arith.constant dense<0.000000e+00> : vector<128x128xf32>
    %26 = tpu.matmul %23, %25, %cst_30 {dimension_numbers = #tpu.dot_dimension_numbers<[1], [0], [0], [1], [0, 0, 1, 1], [], []>} : vector<128x4xbf16>, vector<4x128xbf16>, vector<128x128xf32> -> vector<128x128xf32>
    %27 = arith.addf %20, %26 : vector<128x128xf32>
    %c1_31 = arith.constant 1 : index
    %c0_32 = arith.constant 0 : index
    %c0_33 = arith.constant 0 : index
    %28 = vector.load %arg7[%c1_31, %c0_32, %c0_33] : memref<16x18x4xf32, #tpu.memory_space<vmem>>, vector<8x16x4xf32>
    %29 = vector.shape_cast %28 : vector<8x16x4xf32> to vector<128x4xf32>
    %30 = arith.truncf %29 : vector<128x4xf32> to vector<128x4xbf16>
    %c3 = arith.constant 3 : index
    %c0_34 = arith.constant 0 : index
    %c0_35 = arith.constant 0 : index
    %31 = vector.load %arg4[%c3, %c0_34, %c0_35] : memref<9x4x128xbf16, #tpu.memory_space<vmem>>, vector<1x4x128xbf16>
    %32 = vector.shape_cast %31 : vector<1x4x128xbf16> to vector<4x128xbf16>
    %cst_36 = arith.constant dense<0.000000e+00> : vector<128x128xf32>
    %33 = tpu.matmul %30, %32, %cst_36 {dimension_numbers = #tpu.dot_dimension_numbers<[1], [0], [0], [1], [0, 0, 1, 1], [], []>} : vector<128x4xbf16>, vector<4x128xbf16>, vector<128x128xf32> -> vector<128x128xf32>
    %34 = arith.addf %27, %33 : vector<128x128xf32>
    %c1_37 = arith.constant 1 : index
    %c1_38 = arith.constant 1 : index
    %c0_39 = arith.constant 0 : index
    %35 = vector.load %arg7[%c1_37, %c1_38, %c0_39] : memref<16x18x4xf32, #tpu.memory_space<vmem>>, vector<8x16x4xf32>
    %36 = vector.shape_cast %35 : vector<8x16x4xf32> to vector<128x4xf32>
    %37 = arith.truncf %36 : vector<128x4xf32> to vector<128x4xbf16>
    %c4 = arith.constant 4 : index
    %c0_40 = arith.constant 0 : index
    %c0_41 = arith.constant 0 : index
    %38 = vector.load %arg4[%c4, %c0_40, %c0_41] : memref<9x4x128xbf16, #tpu.memory_space<vmem>>, vector<1x4x128xbf16>
    %39 = vector.shape_cast %38 : vector<1x4x128xbf16> to vector<4x128xbf16>
    %cst_42 = arith.constant dense<0.000000e+00> : vector<128x128xf32>
    %40 = tpu.matmul %37, %39, %cst_42 {dimension_numbers = #tpu.dot_dimension_numbers<[1], [0], [0], [1], [0, 0, 1, 1], [], []>} : vector<128x4xbf16>, vector<4x128xbf16>, vector<128x128xf32> -> vector<128x128xf32>
    %41 = arith.addf %34, %40 : vector<128x128xf32>
    %c1_43 = arith.constant 1 : index
    %c2_44 = arith.constant 2 : index
    %c0_45 = arith.constant 0 : index
    %42 = vector.load %arg7[%c1_43, %c2_44, %c0_45] : memref<16x18x4xf32, #tpu.memory_space<vmem>>, vector<8x16x4xf32>
    %43 = vector.shape_cast %42 : vector<8x16x4xf32> to vector<128x4xf32>
    %44 = arith.truncf %43 : vector<128x4xf32> to vector<128x4xbf16>
    %c5 = arith.constant 5 : index
    %c0_46 = arith.constant 0 : index
    %c0_47 = arith.constant 0 : index
    %45 = vector.load %arg4[%c5, %c0_46, %c0_47] : memref<9x4x128xbf16, #tpu.memory_space<vmem>>, vector<1x4x128xbf16>
    %46 = vector.shape_cast %45 : vector<1x4x128xbf16> to vector<4x128xbf16>
    %cst_48 = arith.constant dense<0.000000e+00> : vector<128x128xf32>
    %47 = tpu.matmul %44, %46, %cst_48 {dimension_numbers = #tpu.dot_dimension_numbers<[1], [0], [0], [1], [0, 0, 1, 1], [], []>} : vector<128x4xbf16>, vector<4x128xbf16>, vector<128x128xf32> -> vector<128x128xf32>
    %48 = arith.addf %41, %47 : vector<128x128xf32>
    %c2_49 = arith.constant 2 : index
    %c0_50 = arith.constant 0 : index
    %c0_51 = arith.constant 0 : index
    %49 = vector.load %arg7[%c2_49, %c0_50, %c0_51] : memref<16x18x4xf32, #tpu.memory_space<vmem>>, vector<8x16x4xf32>
    %50 = vector.shape_cast %49 : vector<8x16x4xf32> to vector<128x4xf32>
    %51 = arith.truncf %50 : vector<128x4xf32> to vector<128x4xbf16>
    %c6 = arith.constant 6 : index
    %c0_52 = arith.constant 0 : index
    %c0_53 = arith.constant 0 : index
    %52 = vector.load %arg4[%c6, %c0_52, %c0_53] : memref<9x4x128xbf16, #tpu.memory_space<vmem>>, vector<1x4x128xbf16>
    %53 = vector.shape_cast %52 : vector<1x4x128xbf16> to vector<4x128xbf16>
    %cst_54 = arith.constant dense<0.000000e+00> : vector<128x128xf32>
    %54 = tpu.matmul %51, %53, %cst_54 {dimension_numbers = #tpu.dot_dimension_numbers<[1], [0], [0], [1], [0, 0, 1, 1], [], []>} : vector<128x4xbf16>, vector<4x128xbf16>, vector<128x128xf32> -> vector<128x128xf32>
    %55 = arith.addf %48, %54 : vector<128x128xf32>
    %c2_55 = arith.constant 2 : index
    %c1_56 = arith.constant 1 : index
    %c0_57 = arith.constant 0 : index
    %56 = vector.load %arg7[%c2_55, %c1_56, %c0_57] : memref<16x18x4xf32, #tpu.memory_space<vmem>>, vector<8x16x4xf32>
    %57 = vector.shape_cast %56 : vector<8x16x4xf32> to vector<128x4xf32>
    %58 = arith.truncf %57 : vector<128x4xf32> to vector<128x4xbf16>
    %c7 = arith.constant 7 : index
    %c0_58 = arith.constant 0 : index
    %c0_59 = arith.constant 0 : index
    %59 = vector.load %arg4[%c7, %c0_58, %c0_59] : memref<9x4x128xbf16, #tpu.memory_space<vmem>>, vector<1x4x128xbf16>
    %60 = vector.shape_cast %59 : vector<1x4x128xbf16> to vector<4x128xbf16>
    %cst_60 = arith.constant dense<0.000000e+00> : vector<128x128xf32>
    %61 = tpu.matmul %58, %60, %cst_60 {dimension_numbers = #tpu.dot_dimension_numbers<[1], [0], [0], [1], [0, 0, 1, 1], [], []>} : vector<128x4xbf16>, vector<4x128xbf16>, vector<128x128xf32> -> vector<128x128xf32>
    %62 = arith.addf %55, %61 : vector<128x128xf32>
    %c2_61 = arith.constant 2 : index
    %c2_62 = arith.constant 2 : index
    %c0_63 = arith.constant 0 : index
    %63 = vector.load %arg7[%c2_61, %c2_62, %c0_63] : memref<16x18x4xf32, #tpu.memory_space<vmem>>, vector<8x16x4xf32>
    %64 = vector.shape_cast %63 : vector<8x16x4xf32> to vector<128x4xf32>
    %65 = arith.truncf %64 : vector<128x4xf32> to vector<128x4xbf16>
    %c8_64 = arith.constant 8 : index
    %c0_65 = arith.constant 0 : index
    %c0_66 = arith.constant 0 : index
    %66 = vector.load %arg4[%c8_64, %c0_65, %c0_66] : memref<9x4x128xbf16, #tpu.memory_space<vmem>>, vector<1x4x128xbf16>
    %67 = vector.shape_cast %66 : vector<1x4x128xbf16> to vector<4x128xbf16>
    %cst_67 = arith.constant dense<0.000000e+00> : vector<128x128xf32>
    %68 = tpu.matmul %65, %67, %cst_67 {dimension_numbers = #tpu.dot_dimension_numbers<[1], [0], [0], [1], [0, 0, 1, 1], [], []>} : vector<128x4xbf16>, vector<4x128xbf16>, vector<128x128xf32> -> vector<128x128xf32>
    %69 = arith.addf %62, %68 : vector<128x128xf32>
    %c0_68 = arith.constant 0 : index
    %c0_69 = arith.constant 0 : index
    %c0_70 = arith.constant 0 : index
    %70 = vector.load %arg5[%c0_68, %c0_69, %c0_70] : memref<1x128x128xf32, #tpu.memory_space<vmem>>, vector<1x128x128xf32>
    %71 = vector.shape_cast %70 : vector<1x128x128xf32> to vector<128x128xf32>
    %72 = vector.shape_cast %69 : vector<128x128xf32> to vector<1x128x128xf32>
    tpu.vector_store %arg5[%c0_68, %c0_69, %c0_70], %72 {strides = array<i32>} : memref<1x128x128xf32, #tpu.memory_space<vmem>>, vector<1x128x128xf32>,
    %cst_71 = arith.constant dense<0.000000e+00> : vector<128xf32>
    %73 = vector.multi_reduction <add>, %69, %cst_71 [0] : vector<128x128xf32> to vector<128xf32>
    %74 = vector.shape_cast %73 : vector<128xf32> to vector<1x128xf32>
    %75 = arith.mulf %69, %69 : vector<128x128xf32>
    %cst_72 = arith.constant dense<0.000000e+00> : vector<128xf32>
    %76 = vector.multi_reduction <add>, %75, %cst_72 [0] : vector<128x128xf32> to vector<128xf32>
    %77 = vector.shape_cast %76 : vector<128xf32> to vector<1x128xf32>
    %cst_73 = arith.constant 0.000000e+00 : f32
    %78 = vector.broadcast %cst_73 : f32 to vector<6x128xf32>
    %79 = tpu.concatenate %74, %77, %78 in 0 : vector<1x128xf32>, vector<1x128xf32>, vector<6x128xf32> -> vector<8x128xf32>
    %c0_74 = arith.constant 0 : index
    %c0_75 = arith.constant 0 : index
    %c0_76 = arith.constant 0 : index
    %c0_77 = arith.constant 0 : index
    %80 = vector.load %arg6[%c0_74, %c0_75, %c0_76, %c0_77] : memref<1x1x8x128xf32, #tpu.memory_space<vmem>>, vector<1x1x8x128xf32>
    %81 = vector.shape_cast %80 : vector<1x1x8x128xf32> to vector<8x128xf32>
    %82 = vector.shape_cast %79 : vector<8x128xf32> to vector<1x1x8x128xf32>
    tpu.vector_store %arg6[%c0_74, %c0_75, %c0_76, %c0_77], %82 {strides = array<i32>} : memref<1x1x8x128xf32, #tpu.memory_space<vmem>>, vector<1x1x8x128xf32>,
    return
  }
  func.func @transform_0(%arg0: i32, %arg1: i32) -> (i32, i32, i32, i32) {
    %c0_i32 = arith.constant 0 : i32
    %c0_i32_0 = arith.constant 0 : i32
    %c0_i32_1 = arith.constant 0 : i32
    return %arg0, %arg1, %c0_i32, %c0_i32_0 : i32, i32, i32, i32
  }
  func.func @transform_1(%arg0: i32, %arg1: i32) -> (i32, i32, i32, i32) {
    %c1_i32 = arith.constant 1 : i32
    %0 = arith.addi %arg1, %c1_i32 : i32
    %c1_i32_0 = arith.constant 1 : i32
    %1 = arith.muli %0, %c1_i32_0 : i32
    %c0_i32 = arith.constant 0 : i32
    %c0_i32_1 = arith.constant 0 : i32
    %c0_i32_2 = arith.constant 0 : i32
    return %arg0, %1, %c0_i32, %c0_i32_1 : i32, i32, i32, i32
  }
  func.func @transform_2(%arg0: i32, %arg1: i32) -> (i32, i32, i32) {
    %c0_i32 = arith.constant 0 : i32
    %c0_i32_0 = arith.constant 0 : i32
    %c0_i32_1 = arith.constant 0 : i32
    %c0_i32_2 = arith.constant 0 : i32
    return %c0_i32, %c0_i32_0, %c0_i32_1 : i32, i32, i32
  }
  func.func @transform_3(%arg0: i32, %arg1: i32) -> (i32, i32, i32) {
    %c2_i32 = arith.constant 2 : i32
    %0 = arith.muli %arg0, %c2_i32 : i32
    %1 = arith.addi %0, %arg1 : i32
    %c0_i32 = arith.constant 0 : i32
    %c0_i32_0 = arith.constant 0 : i32
    %c0_i32_1 = arith.constant 0 : i32
    return %1, %c0_i32, %c0_i32_0 : i32, i32, i32
  }
  func.func @transform_4(%arg0: i32, %arg1: i32) -> (i32, i32, i32, i32) {
    %c0_i32 = arith.constant 0 : i32
    %c0_i32_0 = arith.constant 0 : i32
    %c0_i32_1 = arith.constant 0 : i32
    return %arg0, %arg1, %c0_i32, %c0_i32_0 : i32, i32, i32, i32
  }
}

module attributes {stable_mosaic.version = 11 : i64} {
  func.func @_bn_silu_kernel(%arg0: i32, %arg1: memref<1x128x128xf32, #tpu.memory_space<vmem>>, %arg2: memref<1x128xf32, #tpu.memory_space<vmem>>, %arg3: memref<1x128xf32, #tpu.memory_space<vmem>>, %arg4: memref<1x128x128xf32, #tpu.memory_space<vmem>>) attributes {dimension_semantics = [#tpu.dimension_semantics<parallel>], iteration_bounds = array<i64: 4>, scalar_prefetch = 0 : i64, scratch_operands = 0 : i64, tpu.core_type = #tpu.core_type<tc>, window_params = [{transform_indices = @transform_0, window_bounds = array<i64: 1, 128, 128>}, {pipeline_mode = #tpu.pipeline_mode<synchronous>, transform_indices = @transform_1, window_bounds = array<i64: 1, 128>}, {pipeline_mode = #tpu.pipeline_mode<synchronous>, transform_indices = @transform_2, window_bounds = array<i64: 1, 128>}, {transform_indices = @transform_3, window_bounds = array<i64: 1, 128, 128>}]} {
    %c0 = arith.constant 0 : index
    %c0_0 = arith.constant 0 : index
    %c0_1 = arith.constant 0 : index
    %0 = vector.load %arg1[%c0, %c0_0, %c0_1] : memref<1x128x128xf32, #tpu.memory_space<vmem>>, vector<1x128x128xf32>
    %1 = vector.shape_cast %0 : vector<1x128x128xf32> to vector<128x128xf32>
    %c0_2 = arith.constant 0 : index
    %c0_3 = arith.constant 0 : index
    %2 = vector.load %arg2[%c0_2, %c0_3] : memref<1x128xf32, #tpu.memory_space<vmem>>, vector<1x128xf32>
    %3 = vector.broadcast %2 : vector<1x128xf32> to vector<128x128xf32>
    %4 = arith.mulf %1, %3 : vector<128x128xf32>
    %c0_4 = arith.constant 0 : index
    %c0_5 = arith.constant 0 : index
    %5 = vector.load %arg3[%c0_4, %c0_5] : memref<1x128xf32, #tpu.memory_space<vmem>>, vector<1x128xf32>
    %6 = vector.broadcast %5 : vector<1x128xf32> to vector<128x128xf32>
    %7 = arith.addf %4, %6 : vector<128x128xf32>
    %8 = arith.negf %7 : vector<128x128xf32>
    %9 = math.exp %8 : vector<128x128xf32>
    %cst = arith.constant 1.000000e+00 : f32
    %10 = vector.broadcast %cst : f32 to vector<128x128xf32>
    %11 = arith.addf %10, %9 : vector<128x128xf32>
    %12 = arith.divf %10, %11 : vector<128x128xf32>
    %13 = arith.mulf %7, %12 : vector<128x128xf32>
    %c0_6 = arith.constant 0 : index
    %c0_7 = arith.constant 0 : index
    %c0_8 = arith.constant 0 : index
    %14 = vector.load %arg4[%c0_6, %c0_7, %c0_8] : memref<1x128x128xf32, #tpu.memory_space<vmem>>, vector<1x128x128xf32>
    %15 = vector.shape_cast %14 : vector<1x128x128xf32> to vector<128x128xf32>
    %16 = vector.shape_cast %13 : vector<128x128xf32> to vector<1x128x128xf32>
    tpu.vector_store %arg4[%c0_6, %c0_7, %c0_8], %16 {strides = array<i32>} : memref<1x128x128xf32, #tpu.memory_space<vmem>>, vector<1x128x128xf32>,
    return
  }
  func.func @transform_0(%arg0: i32) -> (i32, i32, i32) {
    %c0_i32 = arith.constant 0 : i32
    %c0_i32_0 = arith.constant 0 : i32
    %c0_i32_1 = arith.constant 0 : i32
    return %arg0, %c0_i32, %c0_i32_0 : i32, i32, i32
  }
  func.func @transform_1(%arg0: i32) -> (i32, i32) {
    %c0_i32 = arith.constant 0 : i32
    %c0_i32_0 = arith.constant 0 : i32
    %c0_i32_1 = arith.constant 0 : i32
    return %c0_i32, %c0_i32_0 : i32, i32
  }
  func.func @transform_2(%arg0: i32) -> (i32, i32) {
    %c0_i32 = arith.constant 0 : i32
    %c0_i32_0 = arith.constant 0 : i32
    %c0_i32_1 = arith.constant 0 : i32
    return %c0_i32, %c0_i32_0 : i32, i32
  }
  func.func @transform_3(%arg0: i32) -> (i32, i32, i32) {
    %c0_i32 = arith.constant 0 : i32
    %c0_i32_0 = arith.constant 0 : i32
    %c0_i32_1 = arith.constant 0 : i32
    return %arg0, %c0_i32, %c0_i32_0 : i32, i32, i32
  }
}

</mosaic_0001>

<llo_original>
// kernel: base_conv_forward.3
$region0: #{base_conv_forward.3}
  #allocation0 [shape = 'u32[]', space=smem, size = 0x4, offset = 0x4, fixed_abs, tag = 'smem constant byte address 0x4 - core index']
  #allocation1 [shape = 'u32[144,128]{1,0:T(1,128)}', space=vmem, size = 0x12000, scoped, tag = 'internal scratch']
  %s0 = inlined_call_operand.vmem [shape: f32[4,128,128], index: 0, kind: input, shape index: {}]
  %s1 = inlined_call_operand.vmem [shape: f32[1,128], index: 1, kind: input, shape index: {}]
  %s2 = inlined_call_operand.vmem [shape: f32[1,128], index: 2, kind: input, shape index: {}]
  %s3 = inlined_call_operand.vmem [shape: f32[4,128,128], index: 3, kind: output, shape index: {}]
  %s4 = sld [smem:[#allocation0]]
  $region45: #{base_conv_forward.3} parent=0
    _
  %s6 = ssub.s32 1, %s4
  %s7 = scalar_select 0, %s6, %s4
  loop: start=0, step=1, limit=6
  $region2: #{base_conv_forward.3} parent=0 // loop_pre_header
    _
  $region3: #{base_conv_forward.3} parent=0 // loop_header
    %s9 = sphi 0, %s13
    %p10 = scmp.ge.s32.totalorder %s9, 6
    %s19 = sphi 0, %s21
    %s22 = sphi 0, %s19
    %s23 = sphi 0, %s22
    %s39 = sphi 0, %s23
    %s43 = sphi 0, %s43
    %s45 = sphi 0, %s43
    %s46 = sphi 0, %s45
    %s60 = sphi 0, %s46
    %s64 = sphi 0, %s64
    %s66 = sphi 0, %s64
    %s67 = sphi 0, %s66
    %s81 = sphi 0, %s67
    %s87 = sphi 0, %s89
    %s90 = sphi 0, %s87
    %s91 = sphi 0, %s90
    %s107 = sphi 0, %s91
  $region4: #{base_conv_forward.3} parent=0 // loop_header_branch
    %12 = sbr.rel (%p10) target = $region8
  $region5: #{base_conv_forward.3} parent=0 // loop_body
    %s14 = ssub.s32 %s9, 1
    %s15 = ssub.s32 %s9, 2
    %s16 = sadd.s32 %s9, 1
    %s17 = ssub.s32 %s9, %s16
    %p18 = scmp.eq.s32.totalorder %s17, 0
    %s20 = sadd.s32 %s19, 1
    %s21 = scalar_select %p18, %s19, %s20
    %p24 = pneg %p18
    %p25 = scmp.eq.s32.totalorder %s9, 3
    %p26 = por %p24, %p25
    %p27 = scmp.ne.s32.totalorder %s19, %s22
    %p28 = scmp.eq.s32.totalorder %s9, 0
    %p29 = por %p27, %p28
    %p30 = scmp.ne.s32.totalorder %s19, %s22
    %p31 = scmp.eq.s32.totalorder %s14, 3
    %p32 = por %p30, %p31
    %p33 = scmp.ne.s32.totalorder %s22, %s23
    %p34 = scmp.eq.s32.totalorder %s14, 0
    %p35 = por %p33, %p34
    %p36 = scmp.ne.s32.totalorder %s22, %s23
    %p37 = scmp.eq.s32.totalorder %s15, 3
    %p38 = por %p36, %p37
    %p40 = scmp.ne.s32.totalorder %s23, %s39
    %p41 = scmp.eq.s32.totalorder %s15, 0
    %p42 = por %p40, %p41
    %s44 = sadd.s32 %s43, 1
    %p47 = scmp.eq.s32.totalorder %s9, 3
    %p48 = scmp.ne.s32.totalorder %s43, %s45
    %p49 = scmp.eq.s32.totalorder %s9, 0
    %p50 = por %p48, %p49
    %p51 = scmp.ne.s32.totalorder %s43, %s45
    %p52 = scmp.eq.s32.totalorder %s14, 3
    %p53 = por %p51, %p52
    %p54 = scmp.ne.s32.totalorder %s45, %s46
    %p55 = scmp.eq.s32.totalorder %s14, 0
    %p56 = por %p54, %p55
    %p57 = scmp.ne.s32.totalorder %s45, %s46
    %p58 = scmp.eq.s32.totalorder %s15, 3
    %p59 = por %p57, %p58
    %p61 = scmp.ne.s32.totalorder %s46, %s60
    %p62 = scmp.eq.s32.totalorder %s15, 0
    %p63 = por %p61, %p62
    %s65 = sadd.s32 %s64, 1
    %p68 = scmp.eq.s32.totalorder %s9, 3
    %p69 = scmp.ne.s32.totalorder %s64, %s66
    %p70 = scmp.eq.s32.totalorder %s9, 0
    %p71 = por %p69, %p70
    %p72 = scmp.ne.s32.totalorder %s64, %s66
    %p73 = scmp.eq.s32.totalorder %s14, 3
    %p74 = por %p72, %p73
    %p75 = scmp.ne.s32.totalorder %s66, %s67
    %p76 = scmp.eq.s32.totalorder %s14, 0
    %p77 = por %p75, %p76
    %p78 = scmp.ne.s32.totalorder %s66, %s67
    %p79 = scmp.eq.s32.totalorder %s15, 3
    %p80 = por %p78, %p79
    %p82 = scmp.ne.s32.totalorder %s67, %s81
    %p83 = scmp.eq.s32.totalorder %s15, 0
    %p84 = por %p82, %p83
    %s85 = ssub.s32 %s9, %s16
    %p86 = scmp.eq.s32.totalorder %s85, 0
    %s88 = sadd.s32 %s87, 1
    %s89 = scalar_select %p86, %s87, %s88
    %p92 = pneg %p86
    %p93 = scmp.eq.s32.totalorder %s9, 3
    %p94 = por %p92, %p93
    %p95 = scmp.ne.s32.totalorder %s87, %s90
    %p96 = scmp.eq.s32.totalorder %s9, 0
    %p97 = por %p95, %p96
    %p98 = scmp.ne.s32.totalorder %s87, %s90
    %p99 = scmp.eq.s32.totalorder %s14, 3
    %p100 = por %p98, %p99
    %p101 = scmp.ne.s32.totalorder %s90, %s91
    %p102 = scmp.eq.s32.totalorder %s14, 0
    %p103 = por %p101, %p102
    %p104 = scmp.ne.s32.totalorder %s90, %s91
    %p105 = scmp.eq.s32.totalorder %s15, 3
    %p106 = por %p104, %p105
    %p108 = scmp.ne.s32.totalorder %s91, %s107
    %p109 = scmp.eq.s32.totalorder %s15, 0
    %p110 = por %p108, %p109
    %p111 = scmp.le.s32.totalorder 1, %s9
    %p112 = scmp.lt.s32.totalorder %s9, 5
    %p113 = pnand %p111, %p112
    %p114 = pneg %p113
    // Predicated region
    $region9: #{base_conv_forward.3} parent=5 // pred_check
      _
    $region10: #{base_conv_forward.3} parent=5 // pred_check_branch
      %116 = sbr.rel (%p113) target = $region12
    $region11: #{base_conv_forward.3} parent=5 // pred_region
      %s117 = ssub.s32 %s9, 1
      // Predicated region
      $region13: #{base_conv_forward.3} parent=11 // pred_check
        %p118 = pneg %p56
      $region14: #{base_conv_forward.3} parent=11 // pred_check_branch
        %120 = sbr.rel (%p118) target = $region16
      $region15: #{base_conv_forward.3} parent=11 // pred_region
        _
      $region16: #{base_conv_forward.3} parent=11 // pred_fallthru
        _
      // Predicated region
      $region17: #{base_conv_forward.3} parent=11 // pred_check
        %p121 = pneg %p77
      $region18: #{base_conv_forward.3} parent=11 // pred_check_branch
        %123 = sbr.rel (%p121) target = $region20
      $region19: #{base_conv_forward.3} parent=11 // pred_region
        _
      $region20: #{base_conv_forward.3} parent=11 // pred_fallthru
        _
    $region12: #{base_conv_forward.3} parent=5 // pred_fallthru
      _
    %p124 = scmp.lt.s32.totalorder %s9, 4
    // Predicated region
    $region21: #{base_conv_forward.3} parent=5 // pred_check
      %p125 = pneg %p124
    $region22: #{base_conv_forward.3} parent=5 // pred_check_branch
      %127 = sbr.rel (%p125) target = $region24
    $region23: #{base_conv_forward.3} parent=5 // pred_region
      // Predicated region
      $region25: #{base_conv_forward.3} parent=23 // pred_check
        %p128 = pneg %p29
      $region26: #{base_conv_forward.3} parent=23 // pred_check_branch
        %130 = sbr.rel (%p128) target = $region28
      $region27: #{base_conv_forward.3} parent=23 // pred_region
        %p131 = scmp.lt.s32.totalorder %s9, 3
        %s132 = scalar_select %p131, %s9, 3
        %s133 = smul.addr %s132, 16
        %s134 = smul.addr %s133, 8
        %s135 = scalar_lea.vmem %s0, %s134
      $region28: #{base_conv_forward.3} parent=23 // pred_fallthru
        _
    $region24: #{base_conv_forward.3} parent=5 // pred_fallthru
      _
    %p136 = scmp.le.s32.totalorder 1, %s9
    %p137 = scmp.lt.s32.totalorder %s9, 5
    %p138 = pnand %p136, %p137
    %p139 = pneg %p138
    // Predicated region
    $region29: #{base_conv_forward.3} parent=5 // pred_check
      _
    $region30: #{base_conv_forward.3} parent=5 // pred_check_branch
      %141 = sbr.rel (%p138) target = $region32
    $region31: #{base_conv_forward.3} parent=5 // pred_region
      %s142 = ssub.s32 %s9, 1
      %p143 = scmp.lt.s32.totalorder %s14, 3
      %s144 = scalar_select %p143, %s14, 3
      %s145 = smul.addr %s144, 16
      %s146 = smul.addr %s145, 8
      %s147 = scalar_lea.vmem %s0, %s146
      %p148 = pneg %p35
      %p149 = pneg %p32
      %p150 = pneg %p56
      %p151 = pneg %p53
      %p152 = pneg %p77
      %p153 = pneg %p74
      %p154 = pneg %p103
      %p155 = pneg %p100
      %p156 = scmp.lt.s32.totalorder %s14, 3
      %s157 = scalar_select %p156, %s14, 3
      %s158 = smul.addr %s157, 16
      %s159 = smul.addr %s158, 8
      %s160 = scalar_lea.vmem %s3, %s159
      %p161 = scmp.lt.s32.totalorder %s14, 3
      %s162 = scalar_select %p161, %s14, 3
      %s163 = smul.addr %s162, 16
      %s164 = smul.addr %s163, 8
      %s165 = scalar_lea.vmem %s0, %s164
      %p166 = scmp.lt.s32.totalorder %s14, 3
      %s167 = scalar_select %p166, %s14, 3
      %s168 = smul.addr %s167, 16
      %s169 = smul.addr %s168, 8
      %s170 = scalar_lea.vmem %s3, %s169
      %v171 = vld [vmem:[%s165] sm:$0xff]
      %v172 = vld [vmem:[%s165 + $0x8] sm:$0xff]
      %v173 = vld [vmem:[%s165 + $0x10] sm:$0xff]
      %v174 = vld [vmem:[%s165 + $0x18] sm:$0xff]
      %v175 = vld [vmem:[%s165 + $0x20] sm:$0xff]
      %v176 = vld [vmem:[%s165 + $0x28] sm:$0xff]
      %v177 = vld [vmem:[%s165 + $0x30] sm:$0xff]
      %v178 = vld [vmem:[%s165 + $0x38] sm:$0xff]
      %v179 = vld [vmem:[%s165 + $0x40] sm:$0xff]
      %v180 = vld [vmem:[%s165 + $0x48] sm:$0xff]
      %v181 = vld [vmem:[%s165 + $0x50] sm:$0xff]
      %v182 = vld [vmem:[%s165 + $0x58] sm:$0xff]
      %v183 = vld [vmem:[%s165 + $0x60] sm:$0xff]
      %v184 = vld [vmem:[%s165 + $0x68] sm:$0xff]
      %v185 = vld [vmem:[%s165 + $0x70] sm:$0xff]
      %v186 = vld [vmem:[%s165 + $0x78] sm:$0xff]
      %v187 = vld [vmem:[%s1] sm:$0x1]
      %v189 = vlaneseq
      %v190 = vshrl.u32 %v189, 7
      %v191 = vsub.s32 0, %v190
      %v192 = vrot.slane %v187, %v191
      %v194 = vmul.f32 %v171, %v192
      %v195 = vmul.f32 %v172, %v192
      %v196 = vmul.f32 %v173, %v192
      %v197 = vmul.f32 %v174, %v192
      %v198 = vmul.f32 %v175, %v192
      %v199 = vmul.f32 %v176, %v192
      %v200 = vmul.f32 %v177, %v192
      %v201 = vmul.f32 %v178, %v192
      %v202 = vmul.f32 %v179, %v192
      %v203 = vmul.f32 %v180, %v192
      %v204 = vmul.f32 %v181, %v192
      %v205 = vmul.f32 %v182, %v192
      %v206 = vmul.f32 %v183, %v192
      %v207 = vmul.f32 %v184, %v192
      %v208 = vmul.f32 %v185, %v192
      %v209 = vmul.f32 %v186, %v192
      %v210 = vld [vmem:[%s2] sm:$0x1]
      %v212 = vlaneseq
      %v213 = vshrl.u32 %v212, 7
      %v214 = vsub.s32 0, %v213
      %v215 = vrot.slane %v210, %v214
      %v217 = vadd.f32 %v194, %v215
      %v218 = vadd.f32 %v195, %v215
      %v219 = vadd.f32 %v196, %v215
      %v220 = vadd.f32 %v197, %v215
      %v221 = vadd.f32 %v198, %v215
      %v222 = vadd.f32 %v199, %v215
      %v223 = vadd.f32 %v200, %v215
      %v224 = vadd.f32 %v201, %v215
      %v225 = vadd.f32 %v202, %v215
      %v226 = vadd.f32 %v203, %v215
      %v227 = vadd.f32 %v204, %v215
      %v228 = vadd.f32 %v205, %v215
      %v229 = vadd.f32 %v206, %v215
      %v230 = vadd.f32 %v207, %v215
      %v231 = vadd.f32 %v208, %v215
      %v232 = vadd.f32 %v209, %v215
      %v233 = vxor.u32 %v217, 2147483648
      %v234 = vxor.u32 %v218, 2147483648
      %v235 = vxor.u32 %v219, 2147483648
      %v236 = vxor.u32 %v220, 2147483648
      %v237 = vxor.u32 %v221, 2147483648
      %v238 = vxor.u32 %v222, 2147483648
      %v239 = vxor.u32 %v223, 2147483648
      %v240 = vxor.u32 %v224, 2147483648
      %v241 = vxor.u32 %v225, 2147483648
      %v242 = vxor.u32 %v226, 2147483648
      %v243 = vxor.u32 %v227, 2147483648
      %v244 = vxor.u32 %v228, 2147483648
      %v245 = vxor.u32 %v229, 2147483648
      %v246 = vxor.u32 %v230, 2147483648
      %v247 = vxor.u32 %v231, 2147483648
      %v248 = vxor.u32 %v232, 2147483648
      %v249 = vmul.f32 %v233, 1.442695
      %v250 = vpow.pop %v249
      %v251 = vmul.f32 %v234, 1.442695
      %v252 = vpow.pop %v251
      %v253 = vmul.f32 %v235, 1.442695
      %v254 = vpow.pop %v253
      %v255 = vmul.f32 %v236, 1.442695
      %v256 = vpow.pop %v255
      %v257 = vmul.f32 %v237, 1.442695
      %v258 = vpow.pop %v257
      %v259 = vmul.f32 %v238, 1.442695
      %v260 = vpow.pop %v259
      %v261 = vmul.f32 %v239, 1.442695
      %v262 = vpow.pop %v261
      %v263 = vmul.f32 %v240, 1.442695
      %v264 = vpow.pop %v263
      %v265 = vmul.f32 %v241, 1.442695
      %v266 = vpow.pop %v265
      %v267 = vmul.f32 %v242, 1.442695
      %v268 = vpow.pop %v267
      %v269 = vmul.f32 %v243, 1.442695
      %v270 = vpow.pop %v269
      %v271 = vmul.f32 %v244, 1.442695
      %v272 = vpow.pop %v271
      %v273 = vmul.f32 %v245, 1.442695
      %v274 = vpow.pop %v273
      %v275 = vmul.f32 %v246, 1.442695
      %v276 = vpow.pop %v275
      %v277 = vmul.f32 %v247, 1.442695
      %v278 = vpow.pop %v277
      %v279 = vmul.f32 %v248, 1.442695
      %v280 = vpow.pop %v279
      %v281 = vadd.f32 %v250, 1.0
      %v282 = vadd.f32 %v252, 1.0
      %v283 = vadd.f32 %v254, 1.0
      %v284 = vadd.f32 %v256, 1.0
      %v285 = vadd.f32 %v258, 1.0
      %v286 = vadd.f32 %v260, 1.0
      %v287 = vadd.f32 %v262, 1.0
      %v288 = vadd.f32 %v264, 1.0
      %v289 = vadd.f32 %v266, 1.0
      %v290 = vadd.f32 %v268, 1.0
      %v291 = vadd.f32 %v270, 1.0
      %v292 = vadd.f32 %v272, 1.0
      %v293 = vadd.f32 %v274, 1.0
      %v294 = vadd.f32 %v276, 1.0
      %v295 = vadd.f32 %v278, 1.0
      %v296 = vadd.f32 %v280, 1.0
      %v297 = vrcp.pop %v281
      %v298 = vmul.f32 1.0, %v297
      %v299 = vrcp.pop %v282
      %v300 = vmul.f32 1.0, %v299
      %v301 = vrcp.pop %v283
      %v302 = vmul.f32 1.0, %v301
      %v303 = vrcp.pop %v284
      %v304 = vmul.f32 1.0, %v303
      %v305 = vrcp.pop %v285
      %v306 = vmul.f32 1.0, %v305
      %v307 = vrcp.pop %v286
      %v308 = vmul.f32 1.0, %v307
      %v309 = vrcp.pop %v287
      %v310 = vmul.f32 1.0, %v309
      %v311 = vrcp.pop %v288
      %v312 = vmul.f32 1.0, %v311
      %v313 = vrcp.pop %v289
      %v314 = vmul.f32 1.0, %v313
      %v315 = vrcp.pop %v290
      %v316 = vmul.f32 1.0, %v315
      %v317 = vrcp.pop %v291
      %v318 = vmul.f32 1.0, %v317
      %v319 = vrcp.pop %v292
      %v320 = vmul.f32 1.0, %v319
      %v321 = vrcp.pop %v293
      %v322 = vmul.f32 1.0, %v321
      %v323 = vrcp.pop %v294
      %v324 = vmul.f32 1.0, %v323
      %v325 = vrcp.pop %v295
      %v326 = vmul.f32 1.0, %v325
      %v327 = vrcp.pop %v296
      %v328 = vmul.f32 1.0, %v327
      %v329 = vmul.f32 %v217, %v298
      %v330 = vmul.f32 %v218, %v300
      %v331 = vmul.f32 %v219, %v302
      %v332 = vmul.f32 %v220, %v304
      %v333 = vmul.f32 %v221, %v306
      %v334 = vmul.f32 %v222, %v308
      %v335 = vmul.f32 %v223, %v310
      %v336 = vmul.f32 %v224, %v312
      %v337 = vmul.f32 %v225, %v314
      %v338 = vmul.f32 %v226, %v316
      %v339 = vmul.f32 %v227, %v318
      %v340 = vmul.f32 %v228, %v320
      %v341 = vmul.f32 %v229, %v322
      %v342 = vmul.f32 %v230, %v324
      %v343 = vmul.f32 %v231, %v326
      %v344 = vmul.f32 %v232, %v328
      %345 = vst [vmem:[%s170] sm:$0xff] %v329
      %346 = vst [vmem:[%s170 + $0x8] sm:$0xff] %v330
      %347 = vst [vmem:[%s170 + $0x10] sm:$0xff] %v331
      %348 = vst [vmem:[%s170 + $0x18] sm:$0xff] %v332
      %349 = vst [vmem:[%s170 + $0x20] sm:$0xff] %v333
      %350 = vst [vmem:[%s170 + $0x28] sm:$0xff] %v334
      %351 = vst [vmem:[%s170 + $0x30] sm:$0xff] %v335
      %352 = vst [vmem:[%s170 + $0x38] sm:$0xff] %v336
      %353 = vst [vmem:[%s170 + $0x40] sm:$0xff] %v337
      %354 = vst [vmem:[%s170 + $0x48] sm:$0xff] %v338
      %355 = vst [vmem:[%s170 + $0x50] sm:$0xff] %v339
      %356 = vst [vmem:[%s170 + $0x58] sm:$0xff] %v340
      %357 = vst [vmem:[%s170 + $0x60] sm:$0xff] %v341
      %358 = vst [vmem:[%s170 + $0x68] sm:$0xff] %v342
      %359 = vst [vmem:[%s170 + $0x70] sm:$0xff] %v343
      %360 = vst [vmem:[%s170 + $0x78] sm:$0xff] %v344
      %p361 = scmp.lt.s32.totalorder %s14, 3
      %s362 = scalar_select %p361, %s14, 3
      %s363 = smul.addr %s362, 16
      %s364 = smul.addr %s363, 8
      %s365 = scalar_lea.vmem %s3, %s364
      // Predicated region
      $region33: #{base_conv_forward.3} parent=31 // pred_check
        %p366 = pneg %p100
      $region34: #{base_conv_forward.3} parent=31 // pred_check_branch
        %368 = sbr.rel (%p366) target = $region36
      $region35: #{base_conv_forward.3} parent=31 // pred_region
        _
      $region36: #{base_conv_forward.3} parent=31 // pred_fallthru
        _
    $region32: #{base_conv_forward.3} parent=5 // pred_fallthru
      _
    %p369 = scmp.le.s32.totalorder 2, %s9
    // Predicated region
    $region37: #{base_conv_forward.3} parent=5 // pred_check
      %p370 = pneg %p369
    $region38: #{base_conv_forward.3} parent=5 // pred_check_branch
      %372 = sbr.rel (%p370) target = $region40
    $region39: #{base_conv_forward.3} parent=5 // pred_region
      %s373 = ssub.s32 %s9, 2
      // Predicated region
      $region41: #{base_conv_forward.3} parent=39 // pred_check
        %p374 = pneg %p106
      $region42: #{base_conv_forward.3} parent=39 // pred_check_branch
        %376 = sbr.rel (%p374) target = $region44
      $region43: #{base_conv_forward.3} parent=39 // pred_region
        %p377 = scmp.lt.s32.totalorder %s15, 3
        %s378 = scalar_select %p377, %s15, 3
        %s379 = smul.addr %s378, 16
        %s380 = smul.addr %s379, 8
        %s381 = scalar_lea.vmem %s3, %s380
      $region44: #{base_conv_forward.3} parent=39 // pred_fallthru
        _
    $region40: #{base_conv_forward.3} parent=5 // pred_fallthru
      _
  $region6: #{base_conv_forward.3} parent=0 // loop_footer
    %s13 = sadd.s32 1, %s9
  $region7: #{base_conv_forward.3} parent=0 // loop_footer_branch
    %8 = sbr.rel target = $region3
  $region8: #{base_conv_forward.3} parent=0 // loop_exit
    _

// kernel: base_conv_forward.2
$region0: #{base_conv_forward.2}
  #allocation0 [shape = 'u32[]', space=smem, size = 0x4, offset = 0x4, fixed_abs, tag = 'smem constant byte address 0x4 - core index']
  #allocation1 [shape = 'u32[144,128]{1,0:T(1,128)}', space=vmem, size = 0x12000, scoped, tag = 'internal scratch']
  #allocation2 [shape = 'f32[16,18,4]{2,1,0:T(8,128)}', space=vmem, size = 0x30000, scoped, tag = 'scratch operand']
  %s0 = inlined_call_operand.vmem [shape: f32[2,24,18,4], index: 0, kind: input, shape index: {}, may-alias: {0,1}]
  %s1 = inlined_call_operand.vmem [shape: f32[2,24,18,4], index: 1, kind: input, shape index: {}, may-alias: {0,1}]
  %s2 = inlined_call_operand.vmem [shape: bf16[9,4,128], index: 2, kind: input, shape index: {}]
  %s3 = inlined_call_operand.vmem [shape: f32[4,128,128], index: 3, kind: output, shape index: {0}]
  %s4 = inlined_call_operand.vmem [shape: f32[2,2,8,128], index: 4, kind: output, shape index: {1}]
  %5 = xla_tuple %s3, %s4
  %s6 = sld [smem:[#allocation0]]
  $region53: #{base_conv_forward.2} parent=0
    _
  %s8 = ssub.s32 1, %s6
  %s9 = scalar_select 0, %s8, %s6
  loop: start=0, step=1, limit=6
  $region2: #{base_conv_forward.2} parent=0 // loop_pre_header
    _
  $region3: #{base_conv_forward.2} parent=0 // loop_header
    %s11 = sphi 0, %s15
    %p12 = scmp.ge.s32.totalorder %s11, 6
    %s18 = sphi 0, %s30
    %s19 = sphi 0, %s26
    %s20 = sphi 0, %s18
    %s21 = sphi 0, %s19
    %s22 = sphi 0, %s20
    %s23 = sphi 0, %s21
    %s35 = sphi 0, %s37
    %s38 = sphi 0, %s35
    %s39 = sphi 0, %s38
    %s55 = sphi 0, %s39
    %s65 = sphi 0, %s67
    %s68 = sphi 0, %s65
    %s69 = sphi 0, %s68
    %s85 = sphi 0, %s69
    %s89 = sphi 0, %s89
    %s91 = sphi 0, %s89
    %s92 = sphi 0, %s91
    %s106 = sphi 0, %s92
    %s116 = sphi 0, %s118
    %s119 = sphi 0, %s116
    %s120 = sphi 0, %s119
    %s136 = sphi 0, %s120
    %s144 = sphi 0, %s146
    %s147 = sphi 0, %s144
    %s148 = sphi 0, %s147
    %s164 = sphi 0, %s148
  $region4: #{base_conv_forward.2} parent=0 // loop_header_branch
    %14 = sbr.rel (%p12) target = $region8
  $region5: #{base_conv_forward.2} parent=0 // loop_body
    %s16 = ssub.s32 %s11, 1
    %s17 = ssub.s32 %s11, 2
    %s24 = sadd.s32 1, %s19
    %p25 = scmp.ge.s32.totalorder %s24, 2
    %s26 = scalar_select %p25, 0, %s24
    %s27 = sadd.s32 1, %s18
    %s28 = scalar_select %p25, %s27, %s18
    %p29 = scmp.ge.s32.totalorder %s28, 2
    %s30 = scalar_select %p29, 0, %s28
    %s31 = ssub.s32 %s18, %s30
    %s32 = ssub.s32 %s19, %s26
    %s33 = sor.u32 %s31, %s32
    %p34 = scmp.eq.s32.totalorder %s33, 0
    %s36 = sadd.s32 %s35, 1
    %s37 = scalar_select %p34, %s35, %s36
    %p40 = pneg %p34
    %p41 = scmp.eq.s32.totalorder %s11, 3
    %p42 = por %p40, %p41
    %p43 = scmp.ne.s32.totalorder %s35, %s38
    %p44 = scmp.eq.s32.totalorder %s11, 0
    %p45 = por %p43, %p44
    %p46 = scmp.ne.s32.totalorder %s35, %s38
    %p47 = scmp.eq.s32.totalorder %s16, 3
    %p48 = por %p46, %p47
    %p49 = scmp.ne.s32.totalorder %s38, %s39
    %p50 = scmp.eq.s32.totalorder %s16, 0
    %p51 = por %p49, %p50
    %p52 = scmp.ne.s32.totalorder %s38, %s39
    %p53 = scmp.eq.s32.totalorder %s17, 3
    %p54 = por %p52, %p53
    %p56 = scmp.ne.s32.totalorder %s39, %s55
    %p57 = scmp.eq.s32.totalorder %s17, 0
    %p58 = por %p56, %p57
    %s59 = sadd.s32 %s19, 1
    %s60 = sadd.s32 %s26, 1
    %s61 = ssub.s32 %s18, %s30
    %s62 = ssub.s32 %s59, %s60
    %s63 = sor.u32 %s61, %s62
    %p64 = scmp.eq.s32.totalorder %s63, 0
    %s66 = sadd.s32 %s65, 1
    %s67 = scalar_select %p64, %s65, %s66
    %p70 = pneg %p64
    %p71 = scmp.eq.s32.totalorder %s11, 3
    %p72 = por %p70, %p71
    %p73 = scmp.ne.s32.totalorder %s65, %s68
    %p74 = scmp.eq.s32.totalorder %s11, 0
    %p75 = por %p73, %p74
    %p76 = scmp.ne.s32.totalorder %s65, %s68
    %p77 = scmp.eq.s32.totalorder %s16, 3
    %p78 = por %p76, %p77
    %p79 = scmp.ne.s32.totalorder %s68, %s69
    %p80 = scmp.eq.s32.totalorder %s16, 0
    %p81 = por %p79, %p80
    %p82 = scmp.ne.s32.totalorder %s68, %s69
    %p83 = scmp.eq.s32.totalorder %s17, 3
    %p84 = por %p82, %p83
    %p86 = scmp.ne.s32.totalorder %s69, %s85
    %p87 = scmp.eq.s32.totalorder %s17, 0
    %p88 = por %p86, %p87
    %s90 = sadd.s32 %s89, 1
    %p93 = scmp.eq.s32.totalorder %s11, 3
    %p94 = scmp.ne.s32.totalorder %s89, %s91
    %p95 = scmp.eq.s32.totalorder %s11, 0
    %p96 = por %p94, %p95
    %p97 = scmp.ne.s32.totalorder %s89, %s91
    %p98 = scmp.eq.s32.totalorder %s16, 3
    %p99 = por %p97, %p98
    %p100 = scmp.ne.s32.totalorder %s91, %s92
    %p101 = scmp.eq.s32.totalorder %s16, 0
    %p102 = por %p100, %p101
    %p103 = scmp.ne.s32.totalorder %s91, %s92
    %p104 = scmp.eq.s32.totalorder %s17, 3
    %p105 = por %p103, %p104
    %p107 = scmp.ne.s32.totalorder %s92, %s106
    %p108 = scmp.eq.s32.totalorder %s17, 0
    %p109 = por %p107, %p108
    %s110 = smul.u32 %s18, 2
    %s111 = sadd.s32 %s110, %s19
    %s112 = smul.u32 %s30, 2
    %s113 = sadd.s32 %s112, %s26
    %s114 = ssub.s32 %s111, %s113
    %p115 = scmp.eq.s32.totalorder %s114, 0
    %s117 = sadd.s32 %s116, 1
    %s118 = scalar_select %p115, %s116, %s117
    %p121 = pneg %p115
    %p122 = scmp.eq.s32.totalorder %s11, 3
    %p123 = por %p121, %p122
    %p124 = scmp.ne.s32.totalorder %s116, %s119
    %p125 = scmp.eq.s32.totalorder %s11, 0
    %p126 = por %p124, %p125
    %p127 = scmp.ne.s32.totalorder %s116, %s119
    %p128 = scmp.eq.s32.totalorder %s16, 3
    %p129 = por %p127, %p128
    %p130 = scmp.ne.s32.totalorder %s119, %s120
    %p131 = scmp.eq.s32.totalorder %s16, 0
    %p132 = por %p130, %p131
    %p133 = scmp.ne.s32.totalorder %s119, %s120
    %p134 = scmp.eq.s32.totalorder %s17, 3
    %p135 = por %p133, %p134
    %p137 = scmp.ne.s32.totalorder %s120, %s136
    %p138 = scmp.eq.s32.totalorder %s17, 0
    %p139 = por %p137, %p138
    %s140 = ssub.s32 %s18, %s30
    %s141 = ssub.s32 %s19, %s26
    %s142 = sor.u32 %s140, %s141
    %p143 = scmp.eq.s32.totalorder %s142, 0
    %s145 = sadd.s32 %s144, 1
    %s146 = scalar_select %p143, %s144, %s145
    %p149 = pneg %p143
    %p150 = scmp.eq.s32.totalorder %s11, 3
    %p151 = por %p149, %p150
    %p152 = scmp.ne.s32.totalorder %s144, %s147
    %p153 = scmp.eq.s32.totalorder %s11, 0
    %p154 = por %p152, %p153
    %p155 = scmp.ne.s32.totalorder %s144, %s147
    %p156 = scmp.eq.s32.totalorder %s16, 3
    %p157 = por %p155, %p156
    %p158 = scmp.ne.s32.totalorder %s147, %s148
    %p159 = scmp.eq.s32.totalorder %s16, 0
    %p160 = por %p158, %p159
    %p161 = scmp.ne.s32.totalorder %s147, %s148
    %p162 = scmp.eq.s32.totalorder %s17, 3
    %p163 = por %p161, %p162
    %p165 = scmp.ne.s32.totalorder %s148, %s164
    %p166 = scmp.eq.s32.totalorder %s17, 0
    %p167 = por %p165, %p166
    %p168 = scmp.le.s32.totalorder 1, %s11
    %p169 = scmp.lt.s32.totalorder %s11, 5
    %p170 = pnand %p168, %p169
    %p171 = pneg %p170
    // Predicated region
    $region9: #{base_conv_forward.2} parent=5 // pred_check
      _
    $region10: #{base_conv_forward.2} parent=5 // pred_check_branch
      %173 = sbr.rel (%p170) target = $region12
    $region11: #{base_conv_forward.2} parent=5 // pred_region
      %s174 = ssub.s32 %s11, 1
      // Predicated region
      $region13: #{base_conv_forward.2} parent=11 // pred_check
        %p175 = pneg %p102
      $region14: #{base_conv_forward.2} parent=11 // pred_check_branch
        %177 = sbr.rel (%p175) target = $region16
      $region15: #{base_conv_forward.2} parent=11 // pred_region
        _
      $region16: #{base_conv_forward.2} parent=11 // pred_fallthru
        _
    $region12: #{base_conv_forward.2} parent=5 // pred_fallthru
      _
    %p178 = scmp.lt.s32.totalorder %s11, 4
    // Predicated region
    $region17: #{base_conv_forward.2} parent=5 // pred_check
      %p179 = pneg %p178
    $region18: #{base_conv_forward.2} parent=5 // pred_check_branch
      %181 = sbr.rel (%p179) target = $region20
    $region19: #{base_conv_forward.2} parent=5 // pred_region
      // Predicated region
      $region21: #{base_conv_forward.2} parent=19 // pred_check
        %p182 = pneg %p45
      $region22: #{base_conv_forward.2} parent=19 // pred_check_branch
        %184 = sbr.rel (%p182) target = $region24
      $region23: #{base_conv_forward.2} parent=19 // pred_region
        %s185 = smul.u32 8, %s19
        %p186 = scmp.lt.s32.totalorder %s18, 1
        %s187 = scalar_select %p186, %s18, 1
        %p188 = scmp.lt.s32.totalorder %s185, 23
        %s189 = scalar_select %p188, %s185, 23
        %s190 = smul.addr %s189, 3
        %s191 = smul.addr %s187, 72
        %s192 = sadd.s32 %s190, %s191
        %s193 = smul.addr %s192, 8
        %s194 = scalar_lea.vmem %s0, %s193
        %s195 = smul.u32 8, %s19
      $region24: #{base_conv_forward.2} parent=19 // pred_fallthru
        _
      // Predicated region
      $region25: #{base_conv_forward.2} parent=19 // pred_check
        %p196 = pneg %p75
      $region26: #{base_conv_forward.2} parent=19 // pred_check_branch
        %198 = sbr.rel (%p196) target = $region28
      $region27: #{base_conv_forward.2} parent=19 // pred_region
        %s199 = sadd.s32 %s19, 1
        %s200 = smul.u32 8, %s199
        %p201 = scmp.lt.s32.totalorder %s18, 1
        %s202 = scalar_select %p201, %s18, 1
        %p203 = scmp.lt.s32.totalorder %s200, 23
        %s204 = scalar_select %p203, %s200, 23
        %s205 = smul.addr %s204, 3
        %s206 = smul.addr %s202, 72
        %s207 = sadd.s32 %s205, %s206
        %s208 = smul.addr %s207, 8
        %s209 = scalar_lea.vmem %s1, %s208
        %s210 = sadd.s32 %s19, 1
        %s211 = smul.u32 8, %s210
      $region28: #{base_conv_forward.2} parent=19 // pred_fallthru
        _
    $region20: #{base_conv_forward.2} parent=5 // pred_fallthru
      _
    %p212 = scmp.le.s32.totalorder 1, %s11
    %p213 = scmp.lt.s32.totalorder %s11, 5
    %p214 = pnand %p212, %p213
    %p215 = pneg %p214
    // Predicated region
    $region29: #{base_conv_forward.2} parent=5 // pred_check
      _
    $region30: #{base_conv_forward.2} parent=5 // pred_check_branch
      %217 = sbr.rel (%p214) target = $region32
    $region31: #{base_conv_forward.2} parent=5 // pred_region
      %s218 = ssub.s32 %s11, 1
      %s219 = smul.u32 8, %s21
      %p220 = scmp.lt.s32.totalorder %s20, 1
      %s221 = scalar_select %p220, %s20, 1
      %p222 = scmp.lt.s32.totalorder %s219, 23
      %s223 = scalar_select %p222, %s219, 23
      %s224 = smul.addr %s223, 3
      %s225 = smul.addr %s221, 72
      %s226 = sadd.s32 %s224, %s225
      %s227 = smul.addr %s226, 8
      %s228 = scalar_lea.vmem %s0, %s227
      %p229 = pneg %p51
      %p230 = pneg %p48
      %s231 = sadd.s32 %s21, 1
      %s232 = smul.u32 8, %s231
      %p233 = scmp.lt.s32.totalorder %s20, 1
      %s234 = scalar_select %p233, %s20, 1
      %p235 = scmp.lt.s32.totalorder %s232, 23
      %s236 = scalar_select %p235, %s232, 23
      %s237 = smul.addr %s236, 3
      %s238 = smul.addr %s234, 72
      %s239 = sadd.s32 %s237, %s238
      %s240 = smul.addr %s239, 8
      %s241 = scalar_lea.vmem %s1, %s240
      %p242 = pneg %p81
      %p243 = pneg %p78
      %p244 = pneg %p102
      %p245 = pneg %p99
      %p246 = pneg %p132
      %p247 = pneg %p129
      %s248 = smul.u32 %s20, 2
      %s249 = sadd.s32 %s248, %s21
      %p250 = scmp.lt.s32.totalorder %s249, 3
      %s251 = scalar_select %p250, %s249, 3
      %s252 = smul.addr %s251, 16
      %s253 = smul.addr %s252, 8
      %s254 = scalar_lea.vmem %s3, %s253
      %p255 = pneg %p160
      %p256 = pneg %p157
      %p257 = scmp.lt.s32.totalorder %s20, 1
      %s258 = scalar_select %p257, %s20, 1
      %p259 = scmp.lt.s32.totalorder %s21, 1
      %s260 = scalar_select %p259, %s21, 1
      %s261 = smul.addr %s258, 2
      %s262 = sadd.s32 %s260, %s261
      %s263 = smul.addr %s262, 8
      %s264 = scalar_lea.vmem %s4, %s263
      %s265 = smul.u32 8, %s21
      %p266 = scmp.lt.s32.totalorder %s20, 1
      %s267 = scalar_select %p266, %s20, 1
      %p268 = scmp.lt.s32.totalorder %s265, 23
      %s269 = scalar_select %p268, %s265, 23
      %s270 = smul.addr %s269, 3
      %s271 = smul.addr %s267, 72
      %s272 = sadd.s32 %s270, %s271
      %s273 = smul.addr %s272, 8
      %s274 = scalar_lea.vmem %s0, %s273
      %s275 = smul.u32 8, %s21
      %s276 = sadd.s32 %s21, 1
      %s277 = smul.u32 8, %s276
      %p278 = scmp.lt.s32.totalorder %s20, 1
      %s279 = scalar_select %p278, %s20, 1
      %p280 = scmp.lt.s32.totalorder %s277, 23
      %s281 = scalar_select %p280, %s277, 23
      %s282 = smul.addr %s281, 3
      %s283 = smul.addr %s279, 72
      %s284 = sadd.s32 %s282, %s283
      %s285 = smul.addr %s284, 8
      %s286 = scalar_lea.vmem %s1, %s285
      %s287 = sadd.s32 %s21, 1
      %s288 = smul.u32 8, %s287
      %s289 = smul.u32 %s20, 2
      %s290 = sadd.s32 %s289, %s21
      %p291 = scmp.lt.s32.totalorder %s290, 3
      %s292 = scalar_select %p291, %s290, 3
      %s293 = smul.addr %s292, 16
      %s294 = smul.addr %s293, 8
      %s295 = scalar_lea.vmem %s3, %s294
      %s296 = smul.u32 %s20, 2
      %s297 = sadd.s32 %s296, %s21
      %p298 = scmp.lt.s32.totalorder %s20, 1
      %s299 = scalar_select %p298, %s20, 1
      %p300 = scmp.lt.s32.totalorder %s21, 1
      %s301 = scalar_select %p300, %s21, 1
      %s302 = smul.addr %s299, 2
      %s303 = sadd.s32 %s301, %s302
      %s304 = smul.addr %s303, 8
      %s305 = scalar_lea.vmem %s4, %s304
      %v307 = vld [vmem:[%s274] sm:$0xff]
      %v308 = vld [vmem:[%s274 + $0x8] sm:$0xff]
      %v309 = vld [vmem:[%s274 + $0x10] sm:$0x3]
      %v310 = vld [vmem:[%s274 + $0x18] sm:$0xff]
      %v311 = vld [vmem:[%s274 + $0x20] sm:$0xff]
      %v312 = vld [vmem:[%s274 + $0x28] sm:$0x3]
      %v313 = vld [vmem:[%s274 + $0x30] sm:$0xff]
      %v314 = vld [vmem:[%s274 + $0x38] sm:$0xff]
      %v315 = vld [vmem:[%s274 + $0x40] sm:$0x3]
      %v316 = vld [vmem:[%s274 + $0x48] sm:$0xff]
      %v317 = vld [vmem:[%s274 + $0x50] sm:$0xff]
      %v318 = vld [vmem:[%s274 + $0x58] sm:$0x3]
      %v319 = vld [vmem:[%s274 + $0x60] sm:$0xff]
      %v320 = vld [vmem:[%s274 + $0x68] sm:$0xff]
      %v321 = vld [vmem:[%s274 + $0x70] sm:$0x3]
      %v322 = vld [vmem:[%s274 + $0x78] sm:$0xff]
      %v323 = vld [vmem:[%s274 + $0x80] sm:$0xff]
      %v324 = vld [vmem:[%s274 + $0x88] sm:$0x3]
      %v325 = vld [vmem:[%s274 + $0x90] sm:$0xff]
      %v326 = vld [vmem:[%s274 + $0x98] sm:$0xff]
      %v327 = vld [vmem:[%s274 + $0xa0] sm:$0x3]
      %v328 = vld [vmem:[%s274 + $0xa8] sm:$0xff]
      %v329 = vld [vmem:[%s274 + $0xb0] sm:$0xff]
      %v330 = vld [vmem:[%s274 + $0xb8] sm:$0x3]
      %vm331 = vcmask 31744
      %332 = vst.msk [vmem:[#allocation2] sm:$0xff] %vm331, %v307
      %333 = vst.msk [vmem:[#allocation2 + $0x8] sm:$0xff] %vm331, %v308
      %vm334 = vcmask 25600
      %335 = vst.msk [vmem:[#allocation2 + $0x10] sm:$0x3] %vm334, %v309
      %336 = vst.msk [vmem:[#allocation2 + $0x18] sm:$0xff] %vm331, %v310
      %337 = vst.msk [vmem:[#allocation2 + $0x20] sm:$0xff] %vm331, %v311
      %338 = vst.msk [vmem:[#allocation2 + $0x28] sm:$0x3] %vm334, %v312
      %339 = vst.msk [vmem:[#allocation2 + $0x30] sm:$0xff] %vm331, %v313
      %340 = vst.msk [vmem:[#allocation2 + $0x38] sm:$0xff] %vm331, %v314
      %341 = vst.msk [vmem:[#allocation2 + $0x40] sm:$0x3] %vm334, %v315
      %342 = vst.msk [vmem:[#allocation2 + $0x48] sm:$0xff] %vm331, %v316
      %343 = vst.msk [vmem:[#allocation2 + $0x50] sm:$0xff] %vm331, %v317
      %344 = vst.msk [vmem:[#allocation2 + $0x58] sm:$0x3] %vm334, %v318
      %345 = vst.msk [vmem:[#allocation2 + $0x60] sm:$0xff] %vm331, %v319
      %346 = vst.msk [vmem:[#allocation2 + $0x68] sm:$0xff] %vm331, %v320
      %347 = vst.msk [vmem:[#allocation2 + $0x70] sm:$0x3] %vm334, %v321
      %348 = vst.msk [vmem:[#allocation2 + $0x78] sm:$0xff] %vm331, %v322
      %349 = vst.msk [vmem:[#allocation2 + $0x80] sm:$0xff] %vm331, %v323
      %350 = vst.msk [vmem:[#allocation2 + $0x88] sm:$0x3] %vm334, %v324
      %351 = vst.msk [vmem:[#allocation2 + $0x90] sm:$0xff] %vm331, %v325
      %352 = vst.msk [vmem:[#allocation2 + $0x98] sm:$0xff] %vm331, %v326
      %353 = vst.msk [vmem:[#allocation2 + $0xa0] sm:$0x3] %vm334, %v327
      %354 = vst.msk [vmem:[#allocation2 + $0xa8] sm:$0xff] %vm331, %v328
      %355 = vst.msk [vmem:[#allocation2 + $0xb0] sm:$0xff] %vm331, %v329
      %356 = vst.msk [vmem:[#allocation2 + $0xb8] sm:$0x3] %vm334, %v330
      %v357 = vld [vmem:[%s286] sm:$0xff]
      %v358 = vld [vmem:[%s286 + $0x8] sm:$0xff]
      %v359 = vld [vmem:[%s286 + $0x10] sm:$0x3]
      %v360 = vld [vmem:[%s286 + $0x18] sm:$0xff]
      %v361 = vld [vmem:[%s286 + $0x20] sm:$0xff]
      %v362 = vld [vmem:[%s286 + $0x28] sm:$0x3]
      %v363 = vld [vmem:[%s286 + $0x30] sm:$0xff]
      %v364 = vld [vmem:[%s286 + $0x38] sm:$0xff]
      %v365 = vld [vmem:[%s286 + $0x40] sm:$0x3]
      %v366 = vld [vmem:[%s286 + $0x48] sm:$0xff]
      %v367 = vld [vmem:[%s286 + $0x50] sm:$0xff]
      %v368 = vld [vmem:[%s286 + $0x58] sm:$0x3]
      %v369 = vld [vmem:[%s286 + $0x60] sm:$0xff]
      %v370 = vld [vmem:[%s286 + $0x68] sm:$0xff]
      %v371 = vld [vmem:[%s286 + $0x70] sm:$0x3]
      %v372 = vld [vmem:[%s286 + $0x78] sm:$0xff]
      %v373 = vld [vmem:[%s286 + $0x80] sm:$0xff]
      %v374 = vld [vmem:[%s286 + $0x88] sm:$0x3]
      %v375 = vld [vmem:[%s286 + $0x90] sm:$0xff]
      %v376 = vld [vmem:[%s286 + $0x98] sm:$0xff]
      %v377 = vld [vmem:[%s286 + $0xa0] sm:$0x3]
      %v378 = vld [vmem:[%s286 + $0xa8] sm:$0xff]
      %v379 = vld [vmem:[%s286 + $0xb0] sm:$0xff]
      %v380 = vld [vmem:[%s286 + $0xb8] sm:$0x3]
      %s381 = scalar_lea.vmem [#allocation2], 192
      %382 = vst.msk [vmem:[%s381] sm:$0xff] %vm331, %v357
      %383 = vst.msk [vmem:[%s381 + $0x8] sm:$0xff] %vm331, %v358
      %384 = vst.msk [vmem:[%s381 + $0x10] sm:$0x3] %vm334, %v359
      %385 = vst.msk [vmem:[%s381 + $0x18] sm:$0xff] %vm331, %v360
      %386 = vst.msk [vmem:[%s381 + $0x20] sm:$0xff] %vm331, %v361
      %387 = vst.msk [vmem:[%s381 + $0x28] sm:$0x3] %vm334, %v362
      %388 = vst.msk [vmem:[%s381 + $0x30] sm:$0xff] %vm331, %v363
      %389 = vst.msk [vmem:[%s381 + $0x38] sm:$0xff] %vm331, %v364
      %390 = vst.msk [vmem:[%s381 + $0x40] sm:$0x3] %vm334, %v365
      %391 = vst.msk [vmem:[%s381 + $0x48] sm:$0xff] %vm331, %v366
      %392 = vst.msk [vmem:[%s381 + $0x50] sm:$0xff] %vm331, %v367
      %393 = vst.msk [vmem:[%s381 + $0x58] sm:$0x3] %vm334, %v368
      %394 = vst.msk [vmem:[%s381 + $0x60] sm:$0xff] %vm331, %v369
      %395 = vst.msk [vmem:[%s381 + $0x68] sm:$0xff] %vm331, %v370
      %396 = vst.msk [vmem:[%s381 + $0x70] sm:$0x3] %vm334, %v371
      %397 = vst.msk [vmem:[%s381 + $0x78] sm:$0xff] %vm331, %v372
      %398 = vst.msk [vmem:[%s381 + $0x80] sm:$0xff] %vm331, %v373
      %399 = vst.msk [vmem:[%s381 + $0x88] sm:$0x3] %vm334, %v374
      %400 = vst.msk [vmem:[%s381 + $0x90] sm:$0xff] %vm331, %v375
      %401 = vst.msk [vmem:[%s381 + $0x98] sm:$0xff] %vm331, %v376
      %402 = vst.msk [vmem:[%s381 + $0xa0] sm:$0x3] %vm334, %v377
      %403 = vst.msk [vmem:[%s381 + $0xa8] sm:$0xff] %vm331, %v378
      %404 = vst.msk [vmem:[%s381 + $0xb0] sm:$0xff] %vm331, %v379
      %405 = vst.msk [vmem:[%s381 + $0xb8] sm:$0x3] %vm334, %v380
      %v406 = vld [vmem:[#allocation2] sm:$0xff]
      %v407 = vld [vmem:[#allocation2 + $0x8] sm:$0xff]
      %v408 = vld [vmem:[#allocation2 + $0x18] sm:$0xff]
      %v409 = vld [vmem:[#allocation2 + $0x20] sm:$0xff]
      %v410 = vld [vmem:[#allocation2 + $0x30] sm:$0xff]
      %v411 = vld [vmem:[#allocation2 + $0x38] sm:$0xff]
      %v412 = vld [vmem:[#allocation2 + $0x48] sm:$0xff]
      %v413 = vld [vmem:[#allocation2 + $0x50] sm:$0xff]
      %v414 = vld [vmem:[#allocation2 + $0x60] sm:$0xff]
      %v415 = vld [vmem:[#allocation2 + $0x68] sm:$0xff]
      %v416 = vld [vmem:[#allocation2 + $0x78] sm:$0xff]
      %v417 = vld [vmem:[#allocation2 + $0x80] sm:$0xff]
      %v418 = vld [vmem:[#allocation2 + $0x90] sm:$0xff]
      %v419 = vld [vmem:[#allocation2 + $0x98] sm:$0xff]
      %v420 = vld [vmem:[#allocation2 + $0xa8] sm:$0xff]
      %v421 = vld [vmem:[#allocation2 + $0xb0] sm:$0xff]
      %v422 = vpack.c.bf16 %v407, %v406
      %v423 = vpack.c.bf16 %v409, %v408
      %v424 = vpack.c.bf16 %v411, %v410
      %v425 = vpack.c.bf16 %v413, %v412
      %v426 = vpack.c.bf16 %v415, %v414
      %v427 = vpack.c.bf16 %v417, %v416
      %v428 = vpack.c.bf16 %v419, %v418
      %v429 = vpack.c.bf16 %v421, %v420
      %v430 = vld [vmem:[%s2] sm:$0x3]
      %v431 = vld [vmem:[#allocation2 + $0x1] sm:$0xff]
      %v432 = vld [vmem:[#allocation2 + $0x9] sm:$0xff]
      %v433 = vld [vmem:[#allocation2 + $0x19] sm:$0xff]
      %v434 = vld [vmem:[#allocation2 + $0x21] sm:$0xff]
      %v435 = vld [vmem:[#allocation2 + $0x31] sm:$0xff]
      %v436 = vld [vmem:[#allocation2 + $0x39] sm:$0xff]
      %v437 = vld [vmem:[#allocation2 + $0x49] sm:$0xff]
      %v438 = vld [vmem:[#allocation2 + $0x51] sm:$0xff]
      %v439 = vld [vmem:[#allocation2 + $0x61] sm:$0xff]
      %v440 = vld [vmem:[#allocation2 + $0x69] sm:$0xff]
      %v441 = vld [vmem:[#allocation2 + $0x79] sm:$0xff]
      %v442 = vld [vmem:[#allocation2 + $0x81] sm:$0xff]
      %v443 = vld [vmem:[#allocation2 + $0x91] sm:$0xff]
      %v444 = vld [vmem:[#allocation2 + $0x99] sm:$0xff]
      %v445 = vld [vmem:[#allocation2 + $0xa9] sm:$0xff]
      %v446 = vld [vmem:[#allocation2 + $0xb1] sm:$0xff]
      %v447 = vpack.c.bf16 %v432, %v431
      %v448 = vpack.c.bf16 %v434, %v433
      %v449 = vpack.c.bf16 %v436, %v435
      %v450 = vpack.c.bf16 %v438, %v437
      %v451 = vpack.c.bf16 %v440, %v439
      %v452 = vpack.c.bf16 %v442, %v441
      %v453 = vpack.c.bf16 %v444, %v443
      %v454 = vpack.c.bf16 %v446, %v445
      %s455 = scalar_lea.vmem %s2, 2
      %v456 = vld [vmem:[%s455] sm:$0x3]
      %v458 = vsel %vm331, %v447, 0
      %v461 = vsel %vm331, %v448, 0
      %v464 = vsel %vm331, %v449, 0
      %v467 = vsel %vm331, %v450, 0
      %v470 = vsel %vm331, %v451, 0
      %v473 = vsel %vm331, %v452, 0
      %v476 = vsel %vm331, %v453, 0
      %v479 = vsel %vm331, %v454, 0
      %vm481 = vcmask 1041408
      %v483 = vsel %vm481, %v456, 0
      %485 = vmatprep.subr.bf16.mxu0 0
      %486 = vmatpush1.bf16.msra.mxu0 %v483
      %487 = vmatprep.subr.bf16.mxu0 0
      %488 = vmatpush1.bf16.msra.mxu0 0
      %489 = vmatprep.subr.bf16.mxu0 0
      %490 = vmatpush1.bf16.msra.mxu0 0
      %491 = vmatprep.subr.bf16.mxu0 0
      %492 = vmatpush1.bf16.msra.mxu0 0
      %493 = vmatprep.subr.bf16.mxu0 0
      %494 = vmatpush1.bf16.msra.mxu0 0
      %495 = vmatprep.subr.bf16.mxu0 0
      %496 = vmatpush1.bf16.msra.mxu0 0
      %497 = vmatprep.subr.bf16.mxu0 0
      %498 = vmatpush1.bf16.msra.mxu0 0
      %499 = vmatprep.subr.bf16.mxu0 0
      %500 = vmatpush1.bf16.msra.mxu0 0
      %501 = vmatprep.subr.bf16.mxu0 0
      %502 = vmatpush1.bf16.msra.mxu0 0
      %503 = vmatprep.subr.bf16.mxu0 0
      %504 = vmatpush1.bf16.msra.mxu0 0
      %505 = vmatprep.subr.bf16.mxu0 0
      %506 = vmatpush1.bf16.msra.mxu0 0
      %507 = vmatprep.subr.bf16.mxu0 0
      %508 = vmatpush1.bf16.msra.mxu0 0
      %509 = vmatprep.subr.bf16.mxu0 0
      %510 = vmatpush1.bf16.msra.mxu0 0
      %511 = vmatprep.subr.bf16.mxu0 0
      %512 = vmatpush1.bf16.msra.mxu0 0
      %513 = vmatprep.subr.bf16.mxu0 0
      %514 = vmatpush1.bf16.msra.mxu0 0
      %515 = vmatprep.subr.bf16.mxu0 0
      %516 = vmatpush1.bf16.msra.mxu0 0
      %517 = vmatprep.mubr.bf16.mxu0 0
      %518 = vmatmul.mubr.bf16.gmra.mrb[0].mxu0 %v458
      %v519 = vpop.f32.mrb[0].mxu0
      %v520 = vadd.f32 0.0, %v519
      %v521 = vpop.f32.mrb[0].mxu0
      %v522 = vpop.f32.mrb[0].mxu0
      %v523 = vadd.f32 0.0, %v522
      %v524 = vpop.f32.mrb[0].mxu0
      %525 = vmatprep.mubr.bf16.mxu0 0
      %526 = vmatmul.mubr.bf16.gmra.mrb[0].mxu0 %v461
      %v527 = vpop.f32.mrb[0].mxu0
      %v528 = vadd.f32 0.0, %v527
      %v529 = vpop.f32.mrb[0].mxu0
      %v530 = vpop.f32.mrb[0].mxu0
      %v531 = vadd.f32 0.0, %v530
      %v532 = vpop.f32.mrb[0].mxu0
      %533 = vmatprep.mubr.bf16.mxu0 0
      %534 = vmatmul.mubr.bf16.gmra.mrb[0].mxu0 %v464
      %v535 = vpop.f32.mrb[0].mxu0
      %v536 = vadd.f32 0.0, %v535
      %v537 = vpop.f32.mrb[0].mxu0
      %v538 = vpop.f32.mrb[0].mxu0
      %v539 = vadd.f32 0.0, %v538
      %v540 = vpop.f32.mrb[0].mxu0
      %541 = vmatprep.mubr.bf16.mxu0 0
      %542 = vmatmul.mubr.bf16.gmra.mrb[0].mxu0 %v467
      %v543 = vpop.f32.mrb[0].mxu0
      %v544 = vadd.f32 0.0, %v543
      %v545 = vpop.f32.mrb[0].mxu0
      %v546 = vpop.f32.mrb[0].mxu0
      %v547 = vadd.f32 0.0, %v546
      %v548 = vpop.f32.mrb[0].mxu0
      %549 = vmatprep.mubr.bf16.mxu0 0
      %550 = vmatmul.mubr.bf16.gmra.mrb[0].mxu0 %v470
      %v551 = vpop.f32.mrb[0].mxu0
      %v552 = vadd.f32 0.0, %v551
      %v553 = vpop.f32.mrb[0].mxu0
      %v554 = vpop.f32.mrb[0].mxu0
      %v555 = vadd.f32 0.0, %v554
      %v556 = vpop.f32.mrb[0].mxu0
      %557 = vmatprep.mubr.bf16.mxu0 0
      %558 = vmatmul.mubr.bf16.gmra.mrb[0].mxu0 %v473
      %v559 = vpop.f32.mrb[0].mxu0
      %v560 = vadd.f32 0.0, %v559
      %v561 = vpop.f32.mrb[0].mxu0
      %v562 = vpop.f32.mrb[0].mxu0
      %v563 = vadd.f32 0.0, %v562
      %v564 = vpop.f32.mrb[0].mxu0
      %565 = vmatprep.mubr.bf16.mxu0 0
      %566 = vmatmul.mubr.bf16.gmra.mrb[0].mxu0 %v476
      %v567 = vpop.f32.mrb[0].mxu0
      %v568 = vadd.f32 0.0, %v567
      %v569 = vpop.f32.mrb[0].mxu0
      %v570 = vpop.f32.mrb[0].mxu0
      %v571 = vadd.f32 0.0, %v570
      %v572 = vpop.f32.mrb[0].mxu0
      %573 = vmatprep.mubr.bf16.mxu0 0
      %574 = vmatmul.mubr.bf16.gmra.mrb[0].mxu0 %v479
      %v575 = vpop.f32.mrb[0].mxu0
      %v576 = vadd.f32 0.0, %v575
      %v577 = vpop.f32.mrb[0].mxu0
      %v578 = vpop.f32.mrb[0].mxu0
      %v579 = vadd.f32 0.0, %v578
      %v580 = vpop.f32.mrb[0].mxu0
      %581 = vdwg.mxu0
      %v583 = vsel %vm331, %v422, 0
      %v586 = vsel %vm331, %v423, 0
      %v589 = vsel %vm331, %v424, 0
      %v592 = vsel %vm331, %v425, 0
      %v595 = vsel %vm331, %v426, 0
      %v598 = vsel %vm331, %v427, 0
      %v601 = vsel %vm331, %v428, 0
      %v604 = vsel %vm331, %v429, 0
      %v607 = vsel %vm481, %v430, 0
      %609 = vmatprep.subr.bf16.mxu0 0
      %610 = vmatpush1.bf16.msra.mxu0 %v607
      %611 = vmatprep.subr.bf16.mxu0 0
      %612 = vmatpush1.bf16.msra.mxu0 0
      %613 = vmatprep.subr.bf16.mxu0 0
      %614 = vmatpush1.bf16.msra.mxu0 0
      %615 = vmatprep.subr.bf16.mxu0 0
      %616 = vmatpush1.bf16.msra.mxu0 0
      %617 = vmatprep.subr.bf16.mxu0 0
      %618 = vmatpush1.bf16.msra.mxu0 0
      %619 = vmatprep.subr.bf16.mxu0 0
      %620 = vmatpush1.bf16.msra.mxu0 0
      %621 = vmatprep.subr.bf16.mxu0 0
      %622 = vmatpush1.bf16.msra.mxu0 0
      %623 = vmatprep.subr.bf16.mxu0 0
      %624 = vmatpush1.bf16.msra.mxu0 0
      %625 = vmatprep.subr.bf16.mxu0 0
      %626 = vmatpush1.bf16.msra.mxu0 0
      %627 = vmatprep.subr.bf16.mxu0 0
      %628 = vmatpush1.bf16.msra.mxu0 0
      %629 = vmatprep.subr.bf16.mxu0 0
      %630 = vmatpush1.bf16.msra.mxu0 0
      %631 = vmatprep.subr.bf16.mxu0 0
      %632 = vmatpush1.bf16.msra.mxu0 0
      %633 = vmatprep.subr.bf16.mxu0 0
      %634 = vmatpush1.bf16.msra.mxu0 0
      %635 = vmatprep.subr.bf16.mxu0 0
      %636 = vmatpush1.bf16.msra.mxu0 0
      %637 = vmatprep.subr.bf16.mxu0 0
      %638 = vmatpush1.bf16.msra.mxu0 0
      %639 = vmatprep.subr.bf16.mxu0 0
      %640 = vmatpush1.bf16.msra.mxu0 0
      %641 = vmatprep.mubr.bf16.mxu0 0
      %642 = vmatmul.mubr.bf16.gmra.mrb[0].mxu0 %v583
      %v643 = vpop.f32.mrb[0].mxu0
      %v644 = vadd.f32 %v520, %v643
      %v645 = vpop.f32.mrb[0].mxu0
      %v646 = vpop.f32.mrb[0].mxu0
      %v647 = vadd.f32 %v523, %v646
      %v648 = vpop.f32.mrb[0].mxu0
      %649 = vmatprep.mubr.bf16.mxu0 0
      %650 = vmatmul.mubr.bf16.gmra.mrb[0].mxu0 %v586
      %v651 = vpop.f32.mrb[0].mxu0
      %v652 = vadd.f32 %v528, %v651
      %v653 = vpop.f32.mrb[0].mxu0
      %v654 = vpop.f32.mrb[0].mxu0
      %v655 = vadd.f32 %v531, %v654
      %v656 = vpop.f32.mrb[0].mxu0
      %657 = vmatprep.mubr.bf16.mxu0 0
      %658 = vmatmul.mubr.bf16.gmra.mrb[0].mxu0 %v589
      %v659 = vpop.f32.mrb[0].mxu0
      %v660 = vadd.f32 %v536, %v659
      %v661 = vpop.f32.mrb[0].mxu0
      %v662 = vpop.f32.mrb[0].mxu0
      %v663 = vadd.f32 %v539, %v662
      %v664 = vpop.f32.mrb[0].mxu0
      %665 = vmatprep.mubr.bf16.mxu0 0
      %666 = vmatmul.mubr.bf16.gmra.mrb[0].mxu0 %v592
      %v667 = vpop.f32.mrb[0].mxu0
      %v668 = vadd.f32 %v544, %v667
      %v669 = vpop.f32.mrb[0].mxu0
      %v670 = vpop.f32.mrb[0].mxu0
      %v671 = vadd.f32 %v547, %v670
      %v672 = vpop.f32.mrb[0].mxu0
      %673 = vmatprep.mubr.bf16.mxu0 0
      %674 = vmatmul.mubr.bf16.gmra.mrb[0].mxu0 %v595
      %v675 = vpop.f32.mrb[0].mxu0
      %v676 = vadd.f32 %v552, %v675
      %v677 = vpop.f32.mrb[0].mxu0
      %v678 = vpop.f32.mrb[0].mxu0
      %v679 = vadd.f32 %v555, %v678
      %v680 = vpop.f32.mrb[0].mxu0
      %681 = vmatprep.mubr.bf16.mxu0 0
      %682 = vmatmul.mubr.bf16.gmra.mrb[0].mxu0 %v598
      %v683 = vpop.f32.mrb[0].mxu0
      %v684 = vadd.f32 %v560, %v683
      %v685 = vpop.f32.mrb[0].mxu0
      %v686 = vpop.f32.mrb[0].mxu0
      %v687 = vadd.f32 %v563, %v686
      %v688 = vpop.f32.mrb[0].mxu0
      %689 = vmatprep.mubr.bf16.mxu0 0
      %690 = vmatmul.mubr.bf16.gmra.mrb[0].mxu0 %v601
      %v691 = vpop.f32.mrb[0].mxu0
      %v692 = vadd.f32 %v568, %v691
      %v693 = vpop.f32.mrb[0].mxu0
      %v694 = vpop.f32.mrb[0].mxu0
      %v695 = vadd.f32 %v571, %v694
      %v696 = vpop.f32.mrb[0].mxu0
      %697 = vmatprep.mubr.bf16.mxu0 0
      %698 = vmatmul.mubr.bf16.gmra.mrb[0].mxu0 %v604
      %v699 = vpop.f32.mrb[0].mxu0
      %v700 = vadd.f32 %v576, %v699
      %v701 = vpop.f32.mrb[0].mxu0
      %v702 = vpop.f32.mrb[0].mxu0
      %v703 = vadd.f32 %v579, %v702
      %v704 = vpop.f32.mrb[0].mxu0
      %705 = vdwg.mxu0
      %v706 = vld [vmem:[#allocation2 + $0x2] sm:$0xff]
      %v707 = vld [vmem:[#allocation2 + $0xa] sm:$0xff]
      %v708 = vld [vmem:[#allocation2 + $0x1a] sm:$0xff]
      %v709 = vld [vmem:[#allocation2 + $0x22] sm:$0xff]
      %v710 = vld [vmem:[#allocation2 + $0x32] sm:$0xff]
      %v711 = vld [vmem:[#allocation2 + $0x3a] sm:$0xff]
      %v712 = vld [vmem:[#allocation2 + $0x4a] sm:$0xff]
      %v713 = vld [vmem:[#allocation2 + $0x52] sm:$0xff]
      %v714 = vld [vmem:[#allocation2 + $0x62] sm:$0xff]
      %v715 = vld [vmem:[#allocation2 + $0x6a] sm:$0xff]
      %v716 = vld [vmem:[#allocation2 + $0x7a] sm:$0xff]
      %v717 = vld [vmem:[#allocation2 + $0x82] sm:$0xff]
      %v718 = vld [vmem:[#allocation2 + $0x92] sm:$0xff]
      %v719 = vld [vmem:[#allocation2 + $0x9a] sm:$0xff]
      %v720 = vld [vmem:[#allocation2 + $0xaa] sm:$0xff]
      %v721 = vld [vmem:[#allocation2 + $0xb2] sm:$0xff]
      %v722 = vpack.c.bf16 %v707, %v706
      %v723 = vpack.c.bf16 %v709, %v708
      %v724 = vpack.c.bf16 %v711, %v710
      %v725 = vpack.c.bf16 %v713, %v712
      %v726 = vpack.c.bf16 %v715, %v714
      %v727 = vpack.c.bf16 %v717, %v716
      %v728 = vpack.c.bf16 %v719, %v718
      %v729 = vpack.c.bf16 %v721, %v720
      %s730 = scalar_lea.vmem %s2, 4
      %v731 = vld [vmem:[%s730] sm:$0x3]
      %v733 = vsel %vm331, %v722, 0
      %v736 = vsel %vm331, %v723, 0
      %v739 = vsel %vm331, %v724, 0
      %v742 = vsel %vm331, %v725, 0
      %v745 = vsel %vm331, %v726, 0
      %v748 = vsel %vm331, %v727, 0
      %v751 = vsel %vm331, %v728, 0
      %v754 = vsel %vm331, %v729, 0
      %v757 = vsel %vm481, %v731, 0
      %759 = vmatprep.subr.bf16.mxu0 0
      %760 = vmatpush1.bf16.msra.mxu0 %v757
      %761 = vmatprep.subr.bf16.mxu0 0
      %762 = vmatpush1.bf16.msra.mxu0 0
      %763 = vmatprep.subr.bf16.mxu0 0
      %764 = vmatpush1.bf16.msra.mxu0 0
      %765 = vmatprep.subr.bf16.mxu0 0
      %766 = vmatpush1.bf16.msra.mxu0 0
      %767 = vmatprep.subr.bf16.mxu0 0
      %768 = vmatpush1.bf16.msra.mxu0 0
      %769 = vmatprep.subr.bf16.mxu0 0
      %770 = vmatpush1.bf16.msra.mxu0 0
      %771 = vmatprep.subr.bf16.mxu0 0
      %772 = vmatpush1.bf16.msra.mxu0 0
      %773 = vmatprep.subr.bf16.mxu0 0
      %774 = vmatpush1.bf16.msra.mxu0 0
      %775 = vmatprep.subr.bf16.mxu0 0
      %776 = vmatpush1.bf16.msra.mxu0 0
      %777 = vmatprep.subr.bf16.mxu0 0
      %778 = vmatpush1.bf16.msra.mxu0 0
      %779 = vmatprep.subr.bf16.mxu0 0
      %780 = vmatpush1.bf16.msra.mxu0 0
      %781 = vmatprep.subr.bf16.mxu0 0
      %782 = vmatpush1.bf16.msra.mxu0 0
      %783 = vmatprep.subr.bf16.mxu0 0
      %784 = vmatpush1.bf16.msra.mxu0 0
      %785 = vmatprep.subr.bf16.mxu0 0
      %786 = vmatpush1.bf16.msra.mxu0 0
      %787 = vmatprep.subr.bf16.mxu0 0
      %788 = vmatpush1.bf16.msra.mxu0 0
      %789 = vmatprep.subr.bf16.mxu0 0
      %790 = vmatpush1.bf16.msra.mxu0 0
      %791 = vmatprep.mubr.bf16.mxu0 0
      %792 = vmatmul.mubr.bf16.gmra.mrb[0].mxu0 %v733
      %v793 = vpop.f32.mrb[0].mxu0
      %v794 = vadd.f32 0.0, %v793
      %v795 = vpop.f32.mrb[0].mxu0
      %v796 = vpop.f32.mrb[0].mxu0
      %v797 = vadd.f32 0.0, %v796
      %v798 = vpop.f32.mrb[0].mxu0
      %799 = vmatprep.mubr.bf16.mxu0 0
      %800 = vmatmul.mubr.bf16.gmra.mrb[0].mxu0 %v736
      %v801 = vpop.f32.mrb[0].mxu0
      %v802 = vadd.f32 0.0, %v801
      %v803 = vpop.f32.mrb[0].mxu0
      %v804 = vpop.f32.mrb[0].mxu0
      %v805 = vadd.f32 0.0, %v804
      %v806 = vpop.f32.mrb[0].mxu0
      %807 = vmatprep.mubr.bf16.mxu0 0
      %808 = vmatmul.mubr.bf16.gmra.mrb[0].mxu0 %v739
      %v809 = vpop.f32.mrb[0].mxu0
      %v810 = vadd.f32 0.0, %v809
      %v811 = vpop.f32.mrb[0].mxu0
      %v812 = vpop.f32.mrb[0].mxu0
      %v813 = vadd.f32 0.0, %v812
      %v814 = vpop.f32.mrb[0].mxu0
      %815 = vmatprep.mubr.bf16.mxu0 0
      %816 = vmatmul.mubr.bf16.gmra.mrb[0].mxu0 %v742
      %v817 = vpop.f32.mrb[0].mxu0
      %v818 = vadd.f32 0.0, %v817
      %v819 = vpop.f32.mrb[0].mxu0
      %v820 = vpop.f32.mrb[0].mxu0
      %v821 = vadd.f32 0.0, %v820
      %v822 = vpop.f32.mrb[0].mxu0
      %823 = vmatprep.mubr.bf16.mxu0 0
      %824 = vmatmul.mubr.bf16.gmra.mrb[0].mxu0 %v745
      %v825 = vpop.f32.mrb[0].mxu0
      %v826 = vadd.f32 0.0, %v825
      %v827 = vpop.f32.mrb[0].mxu0
      %v828 = vpop.f32.mrb[0].mxu0
      %v829 = vadd.f32 0.0, %v828
      %v830 = vpop.f32.mrb[0].mxu0
      %831 = vmatprep.mubr.bf16.mxu0 0
      %832 = vmatmul.mubr.bf16.gmra.mrb[0].mxu0 %v748
      %v833 = vpop.f32.mrb[0].mxu0
      %v834 = vadd.f32 0.0, %v833
      %v835 = vpop.f32.mrb[0].mxu0
      %v836 = vpop.f32.mrb[0].mxu0
      %v837 = vadd.f32 0.0, %v836
      %v838 = vpop.f32.mrb[0].mxu0
      %839 = vmatprep.mubr.bf16.mxu0 0
      %840 = vmatmul.mubr.bf16.gmra.mrb[0].mxu0 %v751
      %v841 = vpop.f32.mrb[0].mxu0
      %v842 = vadd.f32 0.0, %v841
      %v843 = vpop.f32.mrb[0].mxu0
      %v844 = vpop.f32.mrb[0].mxu0
      %v845 = vadd.f32 0.0, %v844
      %v846 = vpop.f32.mrb[0].mxu0
      %847 = vmatprep.mubr.bf16.mxu0 0
      %848 = vmatmul.mubr.bf16.gmra.mrb[0].mxu0 %v754
      %v849 = vpop.f32.mrb[0].mxu0
      %v850 = vadd.f32 0.0, %v849
      %v851 = vpop.f32.mrb[0].mxu0
      %v852 = vpop.f32.mrb[0].mxu0
      %v853 = vadd.f32 0.0, %v852
      %v854 = vpop.f32.mrb[0].mxu0
      %855 = vdwg.mxu0
      %v856 = vadd.f32 %v644, %v794
      %v857 = vadd.f32 %v647, %v797
      %v858 = vadd.f32 %v652, %v802
      %v859 = vadd.f32 %v655, %v805
      %v860 = vadd.f32 %v660, %v810
      %v861 = vadd.f32 %v663, %v813
      %v862 = vadd.f32 %v668, %v818
      %v863 = vadd.f32 %v671, %v821
      %v864 = vadd.f32 %v676, %v826
      %v865 = vadd.f32 %v679, %v829
      %v866 = vadd.f32 %v684, %v834
      %v867 = vadd.f32 %v687, %v837
      %v868 = vadd.f32 %v692, %v842
      %v869 = vadd.f32 %v695, %v845
      %v870 = vadd.f32 %v700, %v850
      %v871 = vadd.f32 %v703, %v853
      %s872 = scalar_lea.vmem [#allocation2], 24
      %v873 = vld [vmem:[%s872] sm:$0xff]
      %v874 = vld [vmem:[%s872 + $0x8] sm:$0xff]
      %v875 = vld [vmem:[%s872 + $0x18] sm:$0xff]
      %v876 = vld [vmem:[%s872 + $0x20] sm:$0xff]
      %v877 = vld [vmem:[%s872 + $0x30] sm:$0xff]
      %v878 = vld [vmem:[%s872 + $0x38] sm:$0xff]
      %v879 = vld [vmem:[%s872 + $0x48] sm:$0xff]
      %v880 = vld [vmem:[%s872 + $0x50] sm:$0xff]
      %v881 = vld [vmem:[%s872 + $0x60] sm:$0xff]
      %v882 = vld [vmem:[%s872 + $0x68] sm:$0xff]
      %v883 = vld [vmem:[%s872 + $0x78] sm:$0xff]
      %v884 = vld [vmem:[%s872 + $0x80] sm:$0xff]
      %v885 = vld [vmem:[%s872 + $0x90] sm:$0xff]
      %v886 = vld [vmem:[%s872 + $0x98] sm:$0xff]
      %v887 = vld [vmem:[%s872 + $0xa8] sm:$0xff]
      %v888 = vld [vmem:[%s872 + $0xb0] sm:$0xff]
      %v889 = vpack.c.bf16 %v874, %v873
      %v890 = vpack.c.bf16 %v876, %v875
      %v891 = vpack.c.bf16 %v878, %v877
      %v892 = vpack.c.bf16 %v880, %v879
      %v893 = vpack.c.bf16 %v882, %v881
      %v894 = vpack.c.bf16 %v884, %v883
      %v895 = vpack.c.bf16 %v886, %v885
      %v896 = vpack.c.bf16 %v888, %v887
      %s897 = scalar_lea.vmem %s2, 6
      %v898 = vld [vmem:[%s897] sm:$0x3]
      %v900 = vsel %vm331, %v889, 0
      %v903 = vsel %vm331, %v890, 0
      %v906 = vsel %vm331, %v891, 0
      %v909 = vsel %vm331, %v892, 0
      %v912 = vsel %vm331, %v893, 0
      %v915 = vsel %vm331, %v894, 0
      %v918 = vsel %vm331, %v895, 0
      %v921 = vsel %vm331, %v896, 0
      %v924 = vsel %vm481, %v898, 0
      %926 = vmatprep.subr.bf16.mxu0 0
      %927 = vmatpush1.bf16.msra.mxu0 %v924
      %928 = vmatprep.subr.bf16.mxu0 0
      %929 = vmatpush1.bf16.msra.mxu0 0
      %930 = vmatprep.subr.bf16.mxu0 0
      %931 = vmatpush1.bf16.msra.mxu0 0
      %932 = vmatprep.subr.bf16.mxu0 0
      %933 = vmatpush1.bf16.msra.mxu0 0
      %934 = vmatprep.subr.bf16.mxu0 0
      %935 = vmatpush1.bf16.msra.mxu0 0
      %936 = vmatprep.subr.bf16.mxu0 0
      %937 = vmatpush1.bf16.msra.mxu0 0
      %938 = vmatprep.subr.bf16.mxu0 0
      %939 = vmatpush1.bf16.msra.mxu0 0
      %940 = vmatprep.subr.bf16.mxu0 0
      %941 = vmatpush1.bf16.msra.mxu0 0
      %942 = vmatprep.subr.bf16.mxu0 0
      %943 = vmatpush1.bf16.msra.mxu0 0
      %944 = vmatprep.subr.bf16.mxu0 0
      %945 = vmatpush1.bf16.msra.mxu0 0
      %946 = vmatprep.subr.bf16.mxu0 0
      %947 = vmatpush1.bf16.msra.mxu0 0
      %948 = vmatprep.subr.bf16.mxu0 0
      %949 = vmatpush1.bf16.msra.mxu0 0
      %950 = vmatprep.subr.bf16.mxu0 0
      %951 = vmatpush1.bf16.msra.mxu0 0
      %952 = vmatprep.subr.bf16.mxu0 0
      %953 = vmatpush1.bf16.msra.mxu0 0
      %954 = vmatprep.subr.bf16.mxu0 0
      %955 = vmatpush1.bf16.msra.mxu0 0
      %956 = vmatprep.subr.bf16.mxu0 0
      %957 = vmatpush1.bf16.msra.mxu0 0
      %958 = vmatprep.mubr.bf16.mxu0 0
      %959 = vmatmul.mubr.bf16.gmra.mrb[0].mxu0 %v900
      %v960 = vpop.f32.mrb[0].mxu0
      %v961 = vadd.f32 0.0, %v960
      %v962 = vpop.f32.mrb[0].mxu0
      %v963 = vpop.f32.mrb[0].mxu0
      %v964 = vadd.f32 0.0, %v963
      %v965 = vpop.f32.mrb[0].mxu0
      %966 = vmatprep.mubr.bf16.mxu0 0
      %967 = vmatmul.mubr.bf16.gmra.mrb[0].mxu0 %v903
      %v968 = vpop.f32.mrb[0].mxu0
      %v969 = vadd.f32 0.0, %v968
      %v970 = vpop.f32.mrb[0].mxu0
      %v971 = vpop.f32.mrb[0].mxu0
      %v972 = vadd.f32 0.0, %v971
      %v973 = vpop.f32.mrb[0].mxu0
      %974 = vmatprep.mubr.bf16.mxu0 0
      %975 = vmatmul.mubr.bf16.gmra.mrb[0].mxu0 %v906
      %v976 = vpop.f32.mrb[0].mxu0
      %v977 = vadd.f32 0.0, %v976
      %v978 = vpop.f32.mrb[0].mxu0
      %v979 = vpop.f32.mrb[0].mxu0
      %v980 = vadd.f32 0.0, %v979
      %v981 = vpop.f32.mrb[0].mxu0
      %982 = vmatprep.mubr.bf16.mxu0 0
      %983 = vmatmul.mubr.bf16.gmra.mrb[0].mxu0 %v909
      %v984 = vpop.f32.mrb[0].mxu0
      %v985 = vadd.f32 0.0, %v984
      %v986 = vpop.f32.mrb[0].mxu0
      %v987 = vpop.f32.mrb[0].mxu0
      %v988 = vadd.f32 0.0, %v987
      %v989 = vpop.f32.mrb[0].mxu0
      %990 = vmatprep.mubr.bf16.mxu0 0
      %991 = vmatmul.mubr.bf16.gmra.mrb[0].mxu0 %v912
      %v992 = vpop.f32.mrb[0].mxu0
      %v993 = vadd.f32 0.0, %v992
      %v994 = vpop.f32.mrb[0].mxu0
      %v995 = vpop.f32.mrb[0].mxu0
      %v996 = vadd.f32 0.0, %v995
      %v997 = vpop.f32.mrb[0].mxu0
      %998 = vmatprep.mubr.bf16.mxu0 0
      %999 = vmatmul.mubr.bf16.gmra.mrb[0].mxu0 %v915
      %v1000 = vpop.f32.mrb[0].mxu0
      %v1001 = vadd.f32 0.0, %v1000
      %v1002 = vpop.f32.mrb[0].mxu0
      %v1003 = vpop.f32.mrb[0].mxu0
      %v1004 = vadd.f32 0.0, %v1003
      %v1005 = vpop.f32.mrb[0].mxu0
      %1006 = vmatprep.mubr.bf16.mxu0 0
      %1007 = vmatmul.mubr.bf16.gmra.mrb[0].mxu0 %v918
      %v1008 = vpop.f32.mrb[0].mxu0
      %v1009 = vadd.f32 0.0, %v1008
      %v1010 = vpop.f32.mrb[0].mxu0
      %v1011 = vpop.f32.mrb[0].mxu0
      %v1012 = vadd.f32 0.0, %v1011
      %v1013 = vpop.f32.mrb[0].mxu0
      %1014 = vmatprep.mubr.bf16.mxu0 0
      %1015 = vmatmul.mubr.bf16.gmra.mrb[0].mxu0 %v921
      %v1016 = vpop.f32.mrb[0].mxu0
      %v1017 = vadd.f32 0.0, %v1016
      %v1018 = vpop.f32.mrb[0].mxu0
      %v1019 = vpop.f32.mrb[0].mxu0
      %v1020 = vadd.f32 0.0, %v1019
      %v1021 = vpop.f32.mrb[0].mxu0
      %1022 = vdwg.mxu0
      %v1023 = vadd.f32 %v856, %v961
      %v1024 = vadd.f32 %v857, %v964
      %v1025 = vadd.f32 %v858, %v969
      %v1026 = vadd.f32 %v859, %v972
      %v1027 = vadd.f32 %v860, %v977
      %v1028 = vadd.f32 %v861, %v980
      %v1029 = vadd.f32 %v862, %v985
      %v1030 = vadd.f32 %v863, %v988
      %v1031 = vadd.f32 %v864, %v993
      %v1032 = vadd.f32 %v865, %v996
      %v1033 = vadd.f32 %v866, %v1001
      %v1034 = vadd.f32 %v867, %v1004
      %v1035 = vadd.f32 %v868, %v1009
      %v1036 = vadd.f32 %v869, %v1012
      %v1037 = vadd.f32 %v870, %v1017
      %v1038 = vadd.f32 %v871, %v1020
      %v1039 = vld [vmem:[%s872 + $0x1] sm:$0xff]
      %v1040 = vld [vmem:[%s872 + $0x9] sm:$0xff]
      %v1041 = vld [vmem:[%s872 + $0x19] sm:$0xff]
      %v1042 = vld [vmem:[%s872 + $0x21] sm:$0xff]
      %v1043 = vld [vmem:[%s872 + $0x31] sm:$0xff]
      %v1044 = vld [vmem:[%s872 + $0x39] sm:$0xff]
      %v1045 = vld [vmem:[%s872 + $0x49] sm:$0xff]
      %v1046 = vld [vmem:[%s872 + $0x51] sm:$0xff]
      %v1047 = vld [vmem:[%s872 + $0x61] sm:$0xff]
      %v1048 = vld [vmem:[%s872 + $0x69] sm:$0xff]
      %v1049 = vld [vmem:[%s872 + $0x79] sm:$0xff]
      %v1050 = vld [vmem:[%s872 + $0x81] sm:$0xff]
      %v1051 = vld [vmem:[%s872 + $0x91] sm:$0xff]
      %v1052 = vld [vmem:[%s872 + $0x99] sm:$0xff]
      %v1053 = vld [vmem:[%s872 + $0xa9] sm:$0xff]
      %v1054 = vld [vmem:[%s872 + $0xb1] sm:$0xff]
      %v1055 = vpack.c.bf16 %v1040, %v1039
      %v1056 = vpack.c.bf16 %v1042, %v1041
      %v1057 = vpack.c.bf16 %v1044, %v1043
      %v1058 = vpack.c.bf16 %v1046, %v1045
      %v1059 = vpack.c.bf16 %v1048, %v1047
      %v1060 = vpack.c.bf16 %v1050, %v1049
      %v1061 = vpack.c.bf16 %v1052, %v1051
      %v1062 = vpack.c.bf16 %v1054, %v1053
      %s1063 = scalar_lea.vmem %s2, 8
      %v1064 = vld [vmem:[%s1063] sm:$0x3]
      %v1066 = vsel %vm331, %v1055, 0
      %v1069 = vsel %vm331, %v1056, 0
      %v1072 = vsel %vm331, %v1057, 0
      %v1075 = vsel %vm331, %v1058, 0
      %v1078 = vsel %vm331, %v1059, 0
      %v1081 = vsel %vm331, %v1060, 0
      %v1084 = vsel %vm331, %v1061, 0
      %v1087 = vsel %vm331, %v1062, 0
      %v1090 = vsel %vm481, %v1064, 0
      %1092 = vmatprep.subr.bf16.mxu0 0
      %1093 = vmatpush1.bf16.msra.mxu0 %v1090
      %1094 = vmatprep.subr.bf16.mxu0 0
      %1095 = vmatpush1.bf16.msra.mxu0 0
      %1096 = vmatprep.subr.bf16.mxu0 0
      %1097 = vmatpush1.bf16.msra.mxu0 0
      %1098 = vmatprep.subr.bf16.mxu0 0
      %1099 = vmatpush1.bf16.msra.mxu0 0
      %1100 = vmatprep.subr.bf16.mxu0 0
      %1101 = vmatpush1.bf16.msra.mxu0 0
      %1102 = vmatprep.subr.bf16.mxu0 0
      %1103 = vmatpush1.bf16.msra.mxu0 0
      %1104 = vmatprep.subr.bf16.mxu0 0
      %1105 = vmatpush1.bf16.msra.mxu0 0
      %1106 = vmatprep.subr.bf16.mxu0 0
      %1107 = vmatpush1.bf16.msra.mxu0 0
      %1108 = vmatprep.subr.bf16.mxu0 0
      %1109 = vmatpush1.bf16.msra.mxu0 0
      %1110 = vmatprep.subr.bf16.mxu0 0
      %1111 = vmatpush1.bf16.msra.mxu0 0
      %1112 = vmatprep.subr.bf16.mxu0 0
      %1113 = vmatpush1.bf16.msra.mxu0 0
      %1114 = vmatprep.subr.bf16.mxu0 0
      %1115 = vmatpush1.bf16.msra.mxu0 0
      %1116 = vmatprep.subr.bf16.mxu0 0
      %1117 = vmatpush1.bf16.msra.mxu0 0
      %1118 = vmatprep.subr.bf16.mxu0 0
      %1119 = vmatpush1.bf16.msra.mxu0 0
      %1120 = vmatprep.subr.bf16.mxu0 0
      %1121 = vmatpush1.bf16.msra.mxu0 0
      %1122 = vmatprep.subr.bf16.mxu0 0
      %1123 = vmatpush1.bf16.msra.mxu0 0
      %1124 = vmatprep.mubr.bf16.mxu0 0
      %1125 = vmatmul.mubr.bf16.gmra.mrb[0].mxu0 %v1066
      %v1126 = vpop.f32.mrb[0].mxu0
      %v1127 = vadd.f32 0.0, %v1126
      %v1128 = vpop.f32.mrb[0].mxu0
      %v1129 = vpop.f32.mrb[0].mxu0
      %v1130 = vadd.f32 0.0, %v1129
      %v1131 = vpop.f32.mrb[0].mxu0
      %1132 = vmatprep.mubr.bf16.mxu0 0
      %1133 = vmatmul.mubr.bf16.gmra.mrb[0].mxu0 %v1069
      %v1134 = vpop.f32.mrb[0].mxu0
      %v1135 = vadd.f32 0.0, %v1134
      %v1136 = vpop.f32.mrb[0].mxu0
      %v1137 = vpop.f32.mrb[0].mxu0
      %v1138 = vadd.f32 0.0, %v1137
      %v1139 = vpop.f32.mrb[0].mxu0
      %1140 = vmatprep.mubr.bf16.mxu0 0
      %1141 = vmatmul.mubr.bf16.gmra.mrb[0].mxu0 %v1072
      %v1142 = vpop.f32.mrb[0].mxu0
      %v1143 = vadd.f32 0.0, %v1142
      %v1144 = vpop.f32.mrb[0].mxu0
      %v1145 = vpop.f32.mrb[0].mxu0
      %v1146 = vadd.f32 0.0, %v1145
      %v1147 = vpop.f32.mrb[0].mxu0
      %1148 = vmatprep.mubr.bf16.mxu0 0
      %1149 = vmatmul.mubr.bf16.gmra.mrb[0].mxu0 %v1075
      %v1150 = vpop.f32.mrb[0].mxu0
      %v1151 = vadd.f32 0.0, %v1150
      %v1152 = vpop.f32.mrb[0].mxu0
      %v1153 = vpop.f32.mrb[0].mxu0
      %v1154 = vadd.f32 0.0, %v1153
      %v1155 = vpop.f32.mrb[0].mxu0
      %1156 = vmatprep.mubr.bf16.mxu0 0
      %1157 = vmatmul.mubr.bf16.gmra.mrb[0].mxu0 %v1078
      %v1158 = vpop.f32.mrb[0].mxu0
      %v1159 = vadd.f32 0.0, %v1158
      %v1160 = vpop.f32.mrb[0].mxu0
      %v1161 = vpop.f32.mrb[0].mxu0
      %v1162 = vadd.f32 0.0, %v1161
      %v1163 = vpop.f32.mrb[0].mxu0
      %1164 = vmatprep.mubr.bf16.mxu0 0
      %1165 = vmatmul.mubr.bf16.gmra.mrb[0].mxu0 %v1081
      %v1166 = vpop.f32.mrb[0].mxu0
      %v1167 = vadd.f32 0.0, %v1166
      %v1168 = vpop.f32.mrb[0].mxu0
      %v1169 = vpop.f32.mrb[0].mxu0
      %v1170 = vadd.f32 0.0, %v1169
      %v1171 = vpop.f32.mrb[0].mxu0
      %1172 = vmatprep.mubr.bf16.mxu0 0
      %1173 = vmatmul.mubr.bf16.gmra.mrb[0].mxu0 %v1084
      %v1174 = vpop.f32.mrb[0].mxu0
      %v1175 = vadd.f32 0.0, %v1174
      %v1176 = vpop.f32.mrb[0].mxu0
      %v1177 = vpop.f32.mrb[0].mxu0
      %v1178 = vadd.f32 0.0, %v1177
      %v1179 = vpop.f32.mrb[0].mxu0
      %1180 = vmatprep.mubr.bf16.mxu0 0
      %1181 = vmatmul.mubr.bf16.gmra.mrb[0].mxu0 %v1087
      %v1182 = vpop.f32.mrb[0].mxu0
      %v1183 = vadd.f32 0.0, %v1182
      %v1184 = vpop.f32.mrb[0].mxu0
      %v1185 = vpop.f32.mrb[0].mxu0
      %v1186 = vadd.f32 0.0, %v1185
      %v1187 = vpop.f32.mrb[0].mxu0
      %1188 = vdwg.mxu0
      %v1189 = vadd.f32 %v1023, %v1127
      %v1190 = vadd.f32 %v1024, %v1130
      %v1191 = vadd.f32 %v1025, %v1135
      %v1192 = vadd.f32 %v1026, %v1138
      %v1193 = vadd.f32 %v1027, %v1143
      %v1194 = vadd.f32 %v1028, %v1146
      %v1195 = vadd.f32 %v1029, %v1151
      %v1196 = vadd.f32 %v1030, %v1154
      %v1197 = vadd.f32 %v1031, %v1159
      %v1198 = vadd.f32 %v1032, %v1162
      %v1199 = vadd.f32 %v1033, %v1167
      %v1200 = vadd.f32 %v1034, %v1170
      %v1201 = vadd.f32 %v1035, %v1175
      %v1202 = vadd.f32 %v1036, %v1178
      %v1203 = vadd.f32 %v1037, %v1183
      %v1204 = vadd.f32 %v1038, %v1186
      %v1205 = vld [vmem:[%s872 + $0x2] sm:$0xff]
      %v1206 = vld [vmem:[%s872 + $0xa] sm:$0xff]
      %v1207 = vld [vmem:[%s872 + $0x1a] sm:$0xff]
      %v1208 = vld [vmem:[%s872 + $0x22] sm:$0xff]
      %v1209 = vld [vmem:[%s872 + $0x32] sm:$0xff]
      %v1210 = vld [vmem:[%s872 + $0x3a] sm:$0xff]
      %v1211 = vld [vmem:[%s872 + $0x4a] sm:$0xff]
      %v1212 = vld [vmem:[%s872 + $0x52] sm:$0xff]
      %v1213 = vld [vmem:[%s872 + $0x62] sm:$0xff]
      %v1214 = vld [vmem:[%s872 + $0x6a] sm:$0xff]
      %v1215 = vld [vmem:[%s872 + $0x7a] sm:$0xff]
      %v1216 = vld [vmem:[%s872 + $0x82] sm:$0xff]
      %v1217 = vld [vmem:[%s872 + $0x92] sm:$0xff]
      %v1218 = vld [vmem:[%s872 + $0x9a] sm:$0xff]
      %v1219 = vld [vmem:[%s872 + $0xaa] sm:$0xff]
      %v1220 = vld [vmem:[%s872 + $0xb2] sm:$0xff]
      %v1221 = vpack.c.bf16 %v1206, %v1205
      %v1222 = vpack.c.bf16 %v1208, %v1207
      %v1223 = vpack.c.bf16 %v1210, %v1209
      %v1224 = vpack.c.bf16 %v1212, %v1211
      %v1225 = vpack.c.bf16 %v1214, %v1213
      %v1226 = vpack.c.bf16 %v1216, %v1215
      %v1227 = vpack.c.bf16 %v1218, %v1217
      %v1228 = vpack.c.bf16 %v1220, %v1219
      %s1229 = scalar_lea.vmem %s2, 10
      %v1230 = vld [vmem:[%s1229] sm:$0x3]
      %v1232 = vsel %vm331, %v1221, 0
      %v1235 = vsel %vm331, %v1222, 0
      %v1238 = vsel %vm331, %v1223, 0
      %v1241 = vsel %vm331, %v1224, 0
      %v1244 = vsel %vm331, %v1225, 0
      %v1247 = vsel %vm331, %v1226, 0
      %v1250 = vsel %vm331, %v1227, 0
      %v1253 = vsel %vm331, %v1228, 0
      %v1256 = vsel %vm481, %v1230, 0
      %1258 = vmatprep.subr.bf16.mxu0 0
      %1259 = vmatpush1.bf16.msra.mxu0 %v1256
      %1260 = vmatprep.subr.bf16.mxu0 0
      %1261 = vmatpush1.bf16.msra.mxu0 0
      %1262 = vmatprep.subr.bf16.mxu0 0
      %1263 = vmatpush1.bf16.msra.mxu0 0
      %1264 = vmatprep.subr.bf16.mxu0 0
      %1265 = vmatpush1.bf16.msra.mxu0 0
      %1266 = vmatprep.subr.bf16.mxu0 0
      %1267 = vmatpush1.bf16.msra.mxu0 0
      %1268 = vmatprep.subr.bf16.mxu0 0
      %1269 = vmatpush1.bf16.msra.mxu0 0
      %1270 = vmatprep.subr.bf16.mxu0 0
      %1271 = vmatpush1.bf16.msra.mxu0 0
      %1272 = vmatprep.subr.bf16.mxu0 0
      %1273 = vmatpush1.bf16.msra.mxu0 0
      %1274 = vmatprep.subr.bf16.mxu0 0
      %1275 = vmatpush1.bf16.msra.mxu0 0
      %1276 = vmatprep.subr.bf16.mxu0 0
      %1277 = vmatpush1.bf16.msra.mxu0 0
      %1278 = vmatprep.subr.bf16.mxu0 0
      %1279 = vmatpush1.bf16.msra.mxu0 0
      %1280 = vmatprep.subr.bf16.mxu0 0
      %1281 = vmatpush1.bf16.msra.mxu0 0
      %1282 = vmatprep.subr.bf16.mxu0 0
      %1283 = vmatpush1.bf16.msra.mxu0 0
      %1284 = vmatprep.subr.bf16.mxu0 0
      %1285 = vmatpush1.bf16.msra.mxu0 0
      %1286 = vmatprep.subr.bf16.mxu0 0
      %1287 = vmatpush1.bf16.msra.mxu0 0
      %1288 = vmatprep.subr.bf16.mxu0 0
      %1289 = vmatpush1.bf16.msra.mxu0 0
      %1290 = vmatprep.mubr.bf16.mxu0 0
      %1291 = vmatmul.mubr.bf16.gmra.mrb[0].mxu0 %v1232
      %v1292 = vpop.f32.mrb[0].mxu0
      %v1293 = vadd.f32 0.0, %v1292
      %v1294 = vpop.f32.mrb[0].mxu0
      %v1295 = vpop.f32.mrb[0].mxu0
      %v1296 = vadd.f32 0.0, %v1295
      %v1297 = vpop.f32.mrb[0].mxu0
      %1298 = vmatprep.mubr.bf16.mxu0 0
      %1299 = vmatmul.mubr.bf16.gmra.mrb[0].mxu0 %v1235
      %v1300 = vpop.f32.mrb[0].mxu0
      %v1301 = vadd.f32 0.0, %v1300
      %v1302 = vpop.f32.mrb[0].mxu0
      %v1303 = vpop.f32.mrb[0].mxu0
      %v1304 = vadd.f32 0.0, %v1303
      %v1305 = vpop.f32.mrb[0].mxu0
      %1306 = vmatprep.mubr.bf16.mxu0 0
      %1307 = vmatmul.mubr.bf16.gmra.mrb[0].mxu0 %v1238
      %v1308 = vpop.f32.mrb[0].mxu0
      %v1309 = vadd.f32 0.0, %v1308
      %v1310 = vpop.f32.mrb[0].mxu0
      %v1311 = vpop.f32.mrb[0].mxu0
      %v1312 = vadd.f32 0.0, %v1311
      %v1313 = vpop.f32.mrb[0].mxu0
      %1314 = vmatprep.mubr.bf16.mxu0 0
      %1315 = vmatmul.mubr.bf16.gmra.mrb[0].mxu0 %v1241
      %v1316 = vpop.f32.mrb[0].mxu0
      %v1317 = vadd.f32 0.0, %v1316
      %v1318 = vpop.f32.mrb[0].mxu0
      %v1319 = vpop.f32.mrb[0].mxu0
      %v1320 = vadd.f32 0.0, %v1319
      %v1321 = vpop.f32.mrb[0].mxu0
      %1322 = vmatprep.mubr.bf16.mxu0 0
      %1323 = vmatmul.mubr.bf16.gmra.mrb[0].mxu0 %v1244
      %v1324 = vpop.f32.mrb[0].mxu0
      %v1325 = vadd.f32 0.0, %v1324
      %v1326 = vpop.f32.mrb[0].mxu0
      %v1327 = vpop.f32.mrb[0].mxu0
      %v1328 = vadd.f32 0.0, %v1327
      %v1329 = vpop.f32.mrb[0].mxu0
      %1330 = vmatprep.mubr.bf16.mxu0 0
      %1331 = vmatmul.mubr.bf16.gmra.mrb[0].mxu0 %v1247
      %v1332 = vpop.f32.mrb[0].mxu0
      %v1333 = vadd.f32 0.0, %v1332
      %v1334 = vpop.f32.mrb[0].mxu0
      %v1335 = vpop.f32.mrb[0].mxu0
      %v1336 = vadd.f32 0.0, %v1335
      %v1337 = vpop.f32.mrb[0].mxu0
      %1338 = vmatprep.mubr.bf16.mxu0 0
      %1339 = vmatmul.mubr.bf16.gmra.mrb[0].mxu0 %v1250
      %v1340 = vpop.f32.mrb[0].mxu0
      %v1341 = vadd.f32 0.0, %v1340
      %v1342 = vpop.f32.mrb[0].mxu0
      %v1343 = vpop.f32.mrb[0].mxu0
      %v1344 = vadd.f32 0.0, %v1343
      %v1345 = vpop.f32.mrb[0].mxu0
      %1346 = vmatprep.mubr.bf16.mxu0 0
      %1347 = vmatmul.mubr.bf16.gmra.mrb[0].mxu0 %v1253
      %v1348 = vpop.f32.mrb[0].mxu0
      %v1349 = vadd.f32 0.0, %v1348
      %v1350 = vpop.f32.mrb[0].mxu0
      %v1351 = vpop.f32.mrb[0].mxu0
      %v1352 = vadd.f32 0.0, %v1351
      %v1353 = vpop.f32.mrb[0].mxu0
      %1354 = vdwg.mxu0
      %v1355 = vadd.f32 %v1189, %v1293
      %v1356 = vadd.f32 %v1190, %v1296
      %v1357 = vadd.f32 %v1191, %v1301
      %v1358 = vadd.f32 %v1192, %v1304
      %v1359 = vadd.f32 %v1193, %v1309
      %v1360 = vadd.f32 %v1194, %v1312
      %v1361 = vadd.f32 %v1195, %v1317
      %v1362 = vadd.f32 %v1196, %v1320
      %v1363 = vadd.f32 %v1197, %v1325
      %v1364 = vadd.f32 %v1198, %v1328
      %v1365 = vadd.f32 %v1199, %v1333
      %v1366 = vadd.f32 %v1200, %v1336
      %v1367 = vadd.f32 %v1201, %v1341
      %v1368 = vadd.f32 %v1202, %v1344
      %v1369 = vadd.f32 %v1203, %v1349
      %v1370 = vadd.f32 %v1204, %v1352
      %s1371 = scalar_lea.vmem [#allocation2], 48
      %v1372 = vld [vmem:[%s1371] sm:$0xff]
      %v1373 = vld [vmem:[%s1371 + $0x8] sm:$0xff]
      %v1374 = vld [vmem:[%s1371 + $0x18] sm:$0xff]
      %v1375 = vld [vmem:[%s1371 + $0x20] sm:$0xff]
      %v1376 = vld [vmem:[%s1371 + $0x30] sm:$0xff]
      %v1377 = vld [vmem:[%s1371 + $0x38] sm:$0xff]
      %v1378 = vld [vmem:[%s1371 + $0x48] sm:$0xff]
      %v1379 = vld [vmem:[%s1371 + $0x50] sm:$0xff]
      %v1380 = vld [vmem:[%s1371 + $0x60] sm:$0xff]
      %v1381 = vld [vmem:[%s1371 + $0x68] sm:$0xff]
      %v1382 = vld [vmem:[%s1371 + $0x78] sm:$0xff]
      %v1383 = vld [vmem:[%s1371 + $0x80] sm:$0xff]
      %v1384 = vld [vmem:[%s1371 + $0x90] sm:$0xff]
      %v1385 = vld [vmem:[%s1371 + $0x98] sm:$0xff]
      %v1386 = vld [vmem:[%s1371 + $0xa8] sm:$0xff]
      %v1387 = vld [vmem:[%s1371 + $0xb0] sm:$0xff]
      %v1388 = vpack.c.bf16 %v1373, %v1372
      %v1389 = vpack.c.bf16 %v1375, %v1374
      %v1390 = vpack.c.bf16 %v1377, %v1376
      %v1391 = vpack.c.bf16 %v1379, %v1378
      %v1392 = vpack.c.bf16 %v1381, %v1380
      %v1393 = vpack.c.bf16 %v1383, %v1382
      %v1394 = vpack.c.bf16 %v1385, %v1384
      %v1395 = vpack.c.bf16 %v1387, %v1386
      %s1396 = scalar_lea.vmem %s2, 12
      %v1397 = vld [vmem:[%s1396] sm:$0x3]
      %v1399 = vsel %vm331, %v1388, 0
      %v1402 = vsel %vm331, %v1389, 0
      %v1405 = vsel %vm331, %v1390, 0
      %v1408 = vsel %vm331, %v1391, 0
      %v1411 = vsel %vm331, %v1392, 0
      %v1414 = vsel %vm331, %v1393, 0
      %v1417 = vsel %vm331, %v1394, 0
      %v1420 = vsel %vm331, %v1395, 0
      %v1423 = vsel %vm481, %v1397, 0
      %1425 = vmatprep.subr.bf16.mxu0 0
      %1426 = vmatpush1.bf16.msra.mxu0 %v1423
      %1427 = vmatprep.subr.bf16.mxu0 0
      %1428 = vmatpush1.bf16.msra.mxu0 0
      %1429 = vmatprep.subr.bf16.mxu0 0
      %1430 = vmatpush1.bf16.msra.mxu0 0
      %1431 = vmatprep.subr.bf16.mxu0 0
      %1432 = vmatpush1.bf16.msra.mxu0 0
      %1433 = vmatprep.subr.bf16.mxu0 0
      %1434 = vmatpush1.bf16.msra.mxu0 0
      %1435 = vmatprep.subr.bf16.mxu0 0
      %1436 = vmatpush1.bf16.msra.mxu0 0
      %1437 = vmatprep.subr.bf16.mxu0 0
      %1438 = vmatpush1.bf16.msra.mxu0 0
      %1439 = vmatprep.subr.bf16.mxu0 0
      %1440 = vmatpush1.bf16.msra.mxu0 0
      %1441 = vmatprep.subr.bf16.mxu0 0
      %1442 = vmatpush1.bf16.msra.mxu0 0
      %1443 = vmatprep.subr.bf16.mxu0 0
      %1444 = vmatpush1.bf16.msra.mxu0 0
      %1445 = vmatprep.subr.bf16.mxu0 0
      %1446 = vmatpush1.bf16.msra.mxu0 0
      %1447 = vmatprep.subr.bf16.mxu0 0
      %1448 = vmatpush1.bf16.msra.mxu0 0
      %1449 = vmatprep.subr.bf16.mxu0 0
      %1450 = vmatpush1.bf16.msra.mxu0 0
      %1451 = vmatprep.subr.bf16.mxu0 0
      %1452 = vmatpush1.bf16.msra.mxu0 0
      %1453 = vmatprep.subr.bf16.mxu0 0
      %1454 = vmatpush1.bf16.msra.mxu0 0
      %1455 = vmatprep.subr.bf16.mxu0 0
      %1456 = vmatpush1.bf16.msra.mxu0 0
      %1457 = vmatprep.mubr.bf16.mxu0 0
      %1458 = vmatmul.mubr.bf16.gmra.mrb[0].mxu0 %v1399
      %v1459 = vpop.f32.mrb[0].mxu0
      %v1460 = vadd.f32 0.0, %v1459
      %v1461 = vpop.f32.mrb[0].mxu0
      %v1462 = vpop.f32.mrb[0].mxu0
      %v1463 = vadd.f32 0.0, %v1462
      %v1464 = vpop.f32.mrb[0].mxu0
      %1465 = vmatprep.mubr.bf16.mxu0 0
      %1466 = vmatmul.mubr.bf16.gmra.mrb[0].mxu0 %v1402
      %v1467 = vpop.f32.mrb[0].mxu0
      %v1468 = vadd.f32 0.0, %v1467
      %v1469 = vpop.f32.mrb[0].mxu0
      %v1470 = vpop.f32.mrb[0].mxu0
      %v1471 = vadd.f32 0.0, %v1470
      %v1472 = vpop.f32.mrb[0].mxu0
      %1473 = vmatprep.mubr.bf16.mxu0 0
      %1474 = vmatmul.mubr.bf16.gmra.mrb[0].mxu0 %v1405
      %v1475 = vpop.f32.mrb[0].mxu0
      %v1476 = vadd.f32 0.0, %v1475
      %v1477 = vpop.f32.mrb[0].mxu0
      %v1478 = vpop.f32.mrb[0].mxu0
      %v1479 = vadd.f32 0.0, %v1478
      %v1480 = vpop.f32.mrb[0].mxu0
      %1481 = vmatprep.mubr.bf16.mxu0 0
      %1482 = vmatmul.mubr.bf16.gmra.mrb[0].mxu0 %v1408
      %v1483 = vpop.f32.mrb[0].mxu0
      %v1484 = vadd.f32 0.0, %v1483
      %v1485 = vpop.f32.mrb[0].mxu0
      %v1486 = vpop.f32.mrb[0].mxu0
      %v1487 = vadd.f32 0.0, %v1486
      %v1488 = vpop.f32.mrb[0].mxu0
      %1489 = vmatprep.mubr.bf16.mxu0 0
      %1490 = vmatmul.mubr.bf16.gmra.mrb[0].mxu0 %v1411
      %v1491 = vpop.f32.mrb[0].mxu0
      %v1492 = vadd.f32 0.0, %v1491
      %v1493 = vpop.f32.mrb[0].mxu0
      %v1494 = vpop.f32.mrb[0].mxu0
      %v1495 = vadd.f32 0.0, %v1494
      %v1496 = vpop.f32.mrb[0].mxu0
      %1497 = vmatprep.mubr.bf16.mxu0 0
      %1498 = vmatmul.mubr.bf16.gmra.mrb[0].mxu0 %v1414
      %v1499 = vpop.f32.mrb[0].mxu0
      %v1500 = vadd.f32 0.0, %v1499
      %v1501 = vpop.f32.mrb[0].mxu0
      %v1502 = vpop.f32.mrb[0].mxu0
      %v1503 = vadd.f32 0.0, %v1502
      %v1504 = vpop.f32.mrb[0].mxu0
      %1505 = vmatprep.mubr.bf16.mxu0 0
      %1506 = vmatmul.mubr.bf16.gmra.mrb[0].mxu0 %v1417
      %v1507 = vpop.f32.mrb[0].mxu0
      %v1508 = vadd.f32 0.0, %v1507
      %v1509 = vpop.f32.mrb[0].mxu0
      %v1510 = vpop.f32.mrb[0].mxu0
      %v1511 = vadd.f32 0.0, %v1510
      %v1512 = vpop.f32.mrb[0].mxu0
      %1513 = vmatprep.mubr.bf16.mxu0 0
      %1514 = vmatmul.mubr.bf16.gmra.mrb[0].mxu0 %v1420
      %v1515 = vpop.f32.mrb[0].mxu0
      %v1516 = vadd.f32 0.0, %v1515
      %v1517 = vpop.f32.mrb[0].mxu0
      %v1518 = vpop.f32.mrb[0].mxu0
      %v1519 = vadd.f32 0.0, %v1518
      %v1520 = vpop.f32.mrb[0].mxu0
      %1521 = vdwg.mxu0
      %v1522 = vadd.f32 %v1355, %v1460
      %v1523 = vadd.f32 %v1356, %v1463
      %v1524 = vadd.f32 %v1357, %v1468
      %v1525 = vadd.f32 %v1358, %v1471
      %v1526 = vadd.f32 %v1359, %v1476
      %v1527 = vadd.f32 %v1360, %v1479
      %v1528 = vadd.f32 %v1361, %v1484
      %v1529 = vadd.f32 %v1362, %v1487
      %v1530 = vadd.f32 %v1363, %v1492
      %v1531 = vadd.f32 %v1364, %v1495
      %v1532 = vadd.f32 %v1365, %v1500
      %v1533 = vadd.f32 %v1366, %v1503
      %v1534 = vadd.f32 %v1367, %v1508
      %v1535 = vadd.f32 %v1368, %v1511
      %v1536 = vadd.f32 %v1369, %v1516
      %v1537 = vadd.f32 %v1370, %v1519
      %v1538 = vld [vmem:[%s1371 + $0x1] sm:$0xff]
      %v1539 = vld [vmem:[%s1371 + $0x9] sm:$0xff]
      %v1540 = vld [vmem:[%s1371 + $0x19] sm:$0xff]
      %v1541 = vld [vmem:[%s1371 + $0x21] sm:$0xff]
      %v1542 = vld [vmem:[%s1371 + $0x31] sm:$0xff]
      %v1543 = vld [vmem:[%s1371 + $0x39] sm:$0xff]
      %v1544 = vld [vmem:[%s1371 + $0x49] sm:$0xff]
      %v1545 = vld [vmem:[%s1371 + $0x51] sm:$0xff]
      %v1546 = vld [vmem:[%s1371 + $0x61] sm:$0xff]
      %v1547 = vld [vmem:[%s1371 + $0x69] sm:$0xff]
      %v1548 = vld [vmem:[%s1371 + $0x79] sm:$0xff]
      %v1549 = vld [vmem:[%s1371 + $0x81] sm:$0xff]
      %v1550 = vld [vmem:[%s1371 + $0x91] sm:$0xff]
      %v1551 = vld [vmem:[%s1371 + $0x99] sm:$0xff]
      %v1552 = vld [vmem:[%s1371 + $0xa9] sm:$0xff]
      %v1553 = vld [vmem:[%s1371 + $0xb1] sm:$0xff]
      %v1554 = vpack.c.bf16 %v1539, %v1538
      %v1555 = vpack.c.bf16 %v1541, %v1540
      %v1556 = vpack.c.bf16 %v1543, %v1542
      %v1557 = vpack.c.bf16 %v1545, %v1544
      %v1558 = vpack.c.bf16 %v1547, %v1546
      %v1559 = vpack.c.bf16 %v1549, %v1548
      %v1560 = vpack.c.bf16 %v1551, %v1550
      %v1561 = vpack.c.bf16 %v1553, %v1552
      %s1562 = scalar_lea.vmem %s2, 14
      %v1563 = vld [vmem:[%s1562] sm:$0x3]
      %v1565 = vsel %vm331, %v1554, 0
      %v1568 = vsel %vm331, %v1555, 0
      %v1571 = vsel %vm331, %v1556, 0
      %v1574 = vsel %vm331, %v1557, 0
      %v1577 = vsel %vm331, %v1558, 0
      %v1580 = vsel %vm331, %v1559, 0
      %v1583 = vsel %vm331, %v1560, 0
      %v1586 = vsel %vm331, %v1561, 0
      %v1589 = vsel %vm481, %v1563, 0
      %1591 = vmatprep.subr.bf16.mxu0 0
      %1592 = vmatpush1.bf16.msra.mxu0 %v1589
      %1593 = vmatprep.subr.bf16.mxu0 0
      %1594 = vmatpush1.bf16.msra.mxu0 0
      %1595 = vmatprep.subr.bf16.mxu0 0
      %1596 = vmatpush1.bf16.msra.mxu0 0
      %1597 = vmatprep.subr.bf16.mxu0 0
      %1598 = vmatpush1.bf16.msra.mxu0 0
      %1599 = vmatprep.subr.bf16.mxu0 0
      %1600 = vmatpush1.bf16.msra.mxu0 0
      %1601 = vmatprep.subr.bf16.mxu0 0
      %1602 = vmatpush1.bf16.msra.mxu0 0
      %1603 = vmatprep.subr.bf16.mxu0 0
      %1604 = vmatpush1.bf16.msra.mxu0 0
      %1605 = vmatprep.subr.bf16.mxu0 0
      %1606 = vmatpush1.bf16.msra.mxu0 0
      %1607 = vmatprep.subr.bf16.mxu0 0
      %1608 = vmatpush1.bf16.msra.mxu0 0
      %1609 = vmatprep.subr.bf16.mxu0 0
      %1610 = vmatpush1.bf16.msra.mxu0 0
      %1611 = vmatprep.subr.bf16.mxu0 0
      %1612 = vmatpush1.bf16.msra.mxu0 0
      %1613 = vmatprep.subr.bf16.mxu0 0
      %1614 = vmatpush1.bf16.msra.mxu0 0
      %1615 = vmatprep.subr.bf16.mxu0 0
      %1616 = vmatpush1.bf16.msra.mxu0 0
      %1617 = vmatprep.subr.bf16.mxu0 0
      %1618 = vmatpush1.bf16.msra.mxu0 0
      %1619 = vmatprep.subr.bf16.mxu0 0
      %1620 = vmatpush1.bf16.msra.mxu0 0
      %1621 = vmatprep.subr.bf16.mxu0 0
      %1622 = vmatpush1.bf16.msra.mxu0 0
      %1623 = vmatprep.mubr.bf16.mxu0 0
      %1624 = vmatmul.mubr.bf16.gmra.mrb[0].mxu0 %v1565
      %v1625 = vpop.f32.mrb[0].mxu0
      %v1626 = vadd.f32 0.0, %v1625
      %v1627 = vpop.f32.mrb[0].mxu0
      %v1628 = vpop.f32.mrb[0].mxu0
      %v1629 = vadd.f32 0.0, %v1628
      %v1630 = vpop.f32.mrb[0].mxu0
      %1631 = vmatprep.mubr.bf16.mxu0 0
      %1632 = vmatmul.mubr.bf16.gmra.mrb[0].mxu0 %v1568
      %v1633 = vpop.f32.mrb[0].mxu0
      %v1634 = vadd.f32 0.0, %v1633
      %v1635 = vpop.f32.mrb[0].mxu0
      %v1636 = vpop.f32.mrb[0].mxu0
      %v1637 = vadd.f32 0.0, %v1636
      %v1638 = vpop.f32.mrb[0].mxu0
      %1639 = vmatprep.mubr.bf16.mxu0 0
      %1640 = vmatmul.mubr.bf16.gmra.mrb[0].mxu0 %v1571
      %v1641 = vpop.f32.mrb[0].mxu0
      %v1642 = vadd.f32 0.0, %v1641
      %v1643 = vpop.f32.mrb[0].mxu0
      %v1644 = vpop.f32.mrb[0].mxu0
      %v1645 = vadd.f32 0.0, %v1644
      %v1646 = vpop.f32.mrb[0].mxu0
      %1647 = vmatprep.mubr.bf16.mxu0 0
      %1648 = vmatmul.mubr.bf16.gmra.mrb[0].mxu0 %v1574
      %v1649 = vpop.f32.mrb[0].mxu0
      %v1650 = vadd.f32 0.0, %v1649
      %v1651 = vpop.f32.mrb[0].mxu0
      %v1652 = vpop.f32.mrb[0].mxu0
      %v1653 = vadd.f32 0.0, %v1652
      %v1654 = vpop.f32.mrb[0].mxu0
      %1655 = vmatprep.mubr.bf16.mxu0 0
      %1656 = vmatmul.mubr.bf16.gmra.mrb[0].mxu0 %v1577
      %v1657 = vpop.f32.mrb[0].mxu0
      %v1658 = vadd.f32 0.0, %v1657
      %v1659 = vpop.f32.mrb[0].mxu0
      %v1660 = vpop.f32.mrb[0].mxu0
      %v1661 = vadd.f32 0.0, %v1660
      %v1662 = vpop.f32.mrb[0].mxu0
      %1663 = vmatprep.mubr.bf16.mxu0 0
      %1664 = vmatmul.mubr.bf16.gmra.mrb[0].mxu0 %v1580
      %v1665 = vpop.f32.mrb[0].mxu0
      %v1666 = vadd.f32 0.0, %v1665
      %v1667 = vpop.f32.mrb[0].mxu0
      %v1668 = vpop.f32.mrb[0].mxu0
      %v1669 = vadd.f32 0.0, %v1668
      %v1670 = vpop.f32.mrb[0].mxu0
      %1671 = vmatprep.mubr.bf16.mxu0 0
      %1672 = vmatmul.mubr.bf16.gmra.mrb[0].mxu0 %v1583
      %v1673 = vpop.f32.mrb[0].mxu0
      %v1674 = vadd.f32 0.0, %v1673
      %v1675 = vpop.f32.mrb[0].mxu0
      %v1676 = vpop.f32.mrb[0].mxu0
      %v1677 = vadd.f32 0.0, %v1676
      %v1678 = vpop.f32.mrb[0].mxu0
      %1679 = vmatprep.mubr.bf16.mxu0 0
      %1680 = vmatmul.mubr.bf16.gmra.mrb[0].mxu0 %v1586
      %v1681 = vpop.f32.mrb[0].mxu0
      %v1682 = vadd.f32 0.0, %v1681
      %v1683 = vpop.f32.mrb[0].mxu0
      %v1684 = vpop.f32.mrb[0].mxu0
      %v1685 = vadd.f32 0.0, %v1684
      %v1686 = vpop.f32.mrb[0].mxu0
      %1687 = vdwg.mxu0
      %v1688 = vadd.f32 %v1522, %v1626
      %v1689 = vadd.f32 %v1523, %v1629
      %v1690 = vadd.f32 %v1524, %v1634
      %v1691 = vadd.f32 %v1525, %v1637
      %v1692 = vadd.f32 %v1526, %v1642
      %v1693 = vadd.f32 %v1527, %v1645
      %v1694 = vadd.f32 %v1528, %v1650
      %v1695 = vadd.f32 %v1529, %v1653
      %v1696 = vadd.f32 %v1530, %v1658
      %v1697 = vadd.f32 %v1531, %v1661
      %v1698 = vadd.f32 %v1532, %v1666
      %v1699 = vadd.f32 %v1533, %v1669
      %v1700 = vadd.f32 %v1534, %v1674
      %v1701 = vadd.f32 %v1535, %v1677
      %v1702 = vadd.f32 %v1536, %v1682
      %v1703 = vadd.f32 %v1537, %v1685
      %v1704 = vld [vmem:[%s1371 + $0x2] sm:$0xff]
      %v1705 = vld [vmem:[%s1371 + $0xa] sm:$0xff]
      %v1706 = vld [vmem:[%s1371 + $0x1a] sm:$0xff]
      %v1707 = vld [vmem:[%s1371 + $0x22] sm:$0xff]
      %v1708 = vld [vmem:[%s1371 + $0x32] sm:$0xff]
      %v1709 = vld [vmem:[%s1371 + $0x3a] sm:$0xff]
      %v1710 = vld [vmem:[%s1371 + $0x4a] sm:$0xff]
      %v1711 = vld [vmem:[%s1371 + $0x52] sm:$0xff]
      %v1712 = vld [vmem:[%s1371 + $0x62] sm:$0xff]
      %v1713 = vld [vmem:[%s1371 + $0x6a] sm:$0xff]
      %v1714 = vld [vmem:[%s1371 + $0x7a] sm:$0xff]
      %v1715 = vld [vmem:[%s1371 + $0x82] sm:$0xff]
      %v1716 = vld [vmem:[%s1371 + $0x92] sm:$0xff]
      %v1717 = vld [vmem:[%s1371 + $0x9a] sm:$0xff]
      %v1718 = vld [vmem:[%s1371 + $0xaa] sm:$0xff]
      %v1719 = vld [vmem:[%s1371 + $0xb2] sm:$0xff]
      %v1720 = vpack.c.bf16 %v1705, %v1704
      %v1721 = vpack.c.bf16 %v1707, %v1706
      %v1722 = vpack.c.bf16 %v1709, %v1708
      %v1723 = vpack.c.bf16 %v1711, %v1710
      %v1724 = vpack.c.bf16 %v1713, %v1712
      %v1725 = vpack.c.bf16 %v1715, %v1714
      %v1726 = vpack.c.bf16 %v1717, %v1716
      %v1727 = vpack.c.bf16 %v1719, %v1718
      %s1728 = scalar_lea.vmem %s2, 16
      %v1729 = vld [vmem:[%s1728] sm:$0x3]
      %v1731 = vsel %vm331, %v1720, 0
      %v1734 = vsel %vm331, %v1721, 0
      %v1737 = vsel %vm331, %v1722, 0
      %v1740 = vsel %vm331, %v1723, 0
      %v1743 = vsel %vm331, %v1724, 0
      %v1746 = vsel %vm331, %v1725, 0
      %v1749 = vsel %vm331, %v1726, 0
      %v1752 = vsel %vm331, %v1727, 0
      %v1755 = vsel %vm481, %v1729, 0
      %1757 = vmatprep.subr.bf16.mxu0 0
      %1758 = vmatpush1.bf16.msra.mxu0 %v1755
      %1759 = vmatprep.subr.bf16.mxu0 0
      %1760 = vmatpush1.bf16.msra.mxu0 0
      %1761 = vmatprep.subr.bf16.mxu0 0
      %1762 = vmatpush1.bf16.msra.mxu0 0
      %1763 = vmatprep.subr.bf16.mxu0 0
      %1764 = vmatpush1.bf16.msra.mxu0 0
      %1765 = vmatprep.subr.bf16.mxu0 0
      %1766 = vmatpush1.bf16.msra.mxu0 0
      %1767 = vmatprep.subr.bf16.mxu0 0
      %1768 = vmatpush1.bf16.msra.mxu0 0
      %1769 = vmatprep.subr.bf16.mxu0 0
      %1770 = vmatpush1.bf16.msra.mxu0 0
      %1771 = vmatprep.subr.bf16.mxu0 0
      %1772 = vmatpush1.bf16.msra.mxu0 0
      %1773 = vmatprep.subr.bf16.mxu0 0
      %1774 = vmatpush1.bf16.msra.mxu0 0
      %1775 = vmatprep.subr.bf16.mxu0 0
      %1776 = vmatpush1.bf16.msra.mxu0 0
      %1777 = vmatprep.subr.bf16.mxu0 0
      %1778 = vmatpush1.bf16.msra.mxu0 0
      %1779 = vmatprep.subr.bf16.mxu0 0
      %1780 = vmatpush1.bf16.msra.mxu0 0
      %1781 = vmatprep.subr.bf16.mxu0 0
      %1782 = vmatpush1.bf16.msra.mxu0 0
      %1783 = vmatprep.subr.bf16.mxu0 0
      %1784 = vmatpush1.bf16.msra.mxu0 0
      %1785 = vmatprep.subr.bf16.mxu0 0
      %1786 = vmatpush1.bf16.msra.mxu0 0
      %1787 = vmatprep.subr.bf16.mxu0 0
      %1788 = vmatpush1.bf16.msra.mxu0 0
      %1789 = vmatprep.mubr.bf16.mxu0 0
      %1790 = vmatmul.mubr.bf16.gmra.mrb[0].mxu0 %v1731
      %v1791 = vpop.f32.mrb[0].mxu0
      %v1792 = vadd.f32 0.0, %v1791
      %v1793 = vpop.f32.mrb[0].mxu0
      %v1794 = vpop.f32.mrb[0].mxu0
      %v1795 = vadd.f32 0.0, %v1794
      %v1796 = vpop.f32.mrb[0].mxu0
      %1797 = vmatprep.mubr.bf16.mxu0 0
      %1798 = vmatmul.mubr.bf16.gmra.mrb[0].mxu0 %v1734
      %v1799 = vpop.f32.mrb[0].mxu0
      %v1800 = vadd.f32 0.0, %v1799
      %v1801 = vpop.f32.mrb[0].mxu0
      %v1802 = vpop.f32.mrb[0].mxu0
      %v1803 = vadd.f32 0.0, %v1802
      %v1804 = vpop.f32.mrb[0].mxu0
      %1805 = vmatprep.mubr.bf16.mxu0 0
      %1806 = vmatmul.mubr.bf16.gmra.mrb[0].mxu0 %v1737
      %v1807 = vpop.f32.mrb[0].mxu0
      %v1808 = vadd.f32 0.0, %v1807
      %v1809 = vpop.f32.mrb[0].mxu0
      %v1810 = vpop.f32.mrb[0].mxu0
      %v1811 = vadd.f32 0.0, %v1810
      %v1812 = vpop.f32.mrb[0].mxu0
      %1813 = vmatprep.mubr.bf16.mxu0 0
      %1814 = vmatmul.mubr.bf16.gmra.mrb[0].mxu0 %v1740
      %v1815 = vpop.f32.mrb[0].mxu0
      %v1816 = vadd.f32 0.0, %v1815
      %v1817 = vpop.f32.mrb[0].mxu0
      %v1818 = vpop.f32.mrb[0].mxu0
      %v1819 = vadd.f32 0.0, %v1818
      %v1820 = vpop.f32.mrb[0].mxu0
      %1821 = vmatprep.mubr.bf16.mxu0 0
      %1822 = vmatmul.mubr.bf16.gmra.mrb[0].mxu0 %v1743
      %v1823 = vpop.f32.mrb[0].mxu0
      %v1824 = vadd.f32 0.0, %v1823
      %v1825 = vpop.f32.mrb[0].mxu0
      %v1826 = vpop.f32.mrb[0].mxu0
      %v1827 = vadd.f32 0.0, %v1826
      %v1828 = vpop.f32.mrb[0].mxu0
      %1829 = vmatprep.mubr.bf16.mxu0 0
      %1830 = vmatmul.mubr.bf16.gmra.mrb[0].mxu0 %v1746
      %v1831 = vpop.f32.mrb[0].mxu0
      %v1832 = vadd.f32 0.0, %v1831
      %v1833 = vpop.f32.mrb[0].mxu0
      %v1834 = vpop.f32.mrb[0].mxu0
      %v1835 = vadd.f32 0.0, %v1834
      %v1836 = vpop.f32.mrb[0].mxu0
      %1837 = vmatprep.mubr.bf16.mxu0 0
      %1838 = vmatmul.mubr.bf16.gmra.mrb[0].mxu0 %v1749
      %v1839 = vpop.f32.mrb[0].mxu0
      %v1840 = vadd.f32 0.0, %v1839
      %v1841 = vpop.f32.mrb[0].mxu0
      %v1842 = vpop.f32.mrb[0].mxu0
      %v1843 = vadd.f32 0.0, %v1842
      %v1844 = vpop.f32.mrb[0].mxu0
      %1845 = vmatprep.mubr.bf16.mxu0 0
      %1846 = vmatmul.mubr.bf16.gmra.mrb[0].mxu0 %v1752
      %v1847 = vpop.f32.mrb[0].mxu0
      %v1848 = vadd.f32 0.0, %v1847
      %v1849 = vpop.f32.mrb[0].mxu0
      %v1850 = vpop.f32.mrb[0].mxu0
      %v1851 = vadd.f32 0.0, %v1850
      %v1852 = vpop.f32.mrb[0].mxu0
      %1853 = vdwg.mxu0
      %v1854 = vadd.f32 %v1688, %v1792
      %v1855 = vadd.f32 %v1689, %v1795
      %v1856 = vadd.f32 %v1690, %v1800
      %v1857 = vadd.f32 %v1691, %v1803
      %v1858 = vadd.f32 %v1692, %v1808
      %v1859 = vadd.f32 %v1693, %v1811
      %v1860 = vadd.f32 %v1694, %v1816
      %v1861 = vadd.f32 %v1695, %v1819
      %v1862 = vadd.f32 %v1696, %v1824
      %v1863 = vadd.f32 %v1697, %v1827
      %v1864 = vadd.f32 %v1698, %v1832
      %v1865 = vadd.f32 %v1699, %v1835
      %v1866 = vadd.f32 %v1700, %v1840
      %v1867 = vadd.f32 %v1701, %v1843
      %v1868 = vadd.f32 %v1702, %v1848
      %v1869 = vadd.f32 %v1703, %v1851
      %1870 = vst [vmem:[%s295] sm:$0xff] %v1854
      %1871 = vst [vmem:[%s295 + $0x8] sm:$0xff] %v1855
      %1872 = vst [vmem:[%s295 + $0x10] sm:$0xff] %v1856
      %1873 = vst [vmem:[%s295 + $0x18] sm:$0xff] %v1857
      %1874 = vst [vmem:[%s295 + $0x20] sm:$0xff] %v1858
      %1875 = vst [vmem:[%s295 + $0x28] sm:$0xff] %v1859
      %1876 = vst [vmem:[%s295 + $0x30] sm:$0xff] %v1860
      %1877 = vst [vmem:[%s295 + $0x38] sm:$0xff] %v1861
      %1878 = vst [vmem:[%s295 + $0x40] sm:$0xff] %v1862
      %1879 = vst [vmem:[%s295 + $0x48] sm:$0xff] %v1863
      %1880 = vst [vmem:[%s295 + $0x50] sm:$0xff] %v1864
      %1881 = vst [vmem:[%s295 + $0x58] sm:$0xff] %v1865
      %1882 = vst [vmem:[%s295 + $0x60] sm:$0xff] %v1866
      %1883 = vst [vmem:[%s295 + $0x68] sm:$0xff] %v1867
      %1884 = vst [vmem:[%s295 + $0x70] sm:$0xff] %v1868
      %1885 = vst [vmem:[%s295 + $0x78] sm:$0xff] %v1869
      %v1886 = vadd.f32 %v1854, %v1855
      %v1887 = vadd.f32 %v1886, %v1856
      %v1888 = vadd.f32 %v1887, %v1857
      %v1889 = vadd.f32 %v1888, %v1858
      %v1890 = vadd.f32 %v1889, %v1859
      %v1891 = vadd.f32 %v1890, %v1860
      %v1892 = vadd.f32 %v1891, %v1861
      %v1893 = vadd.f32 %v1892, %v1862
      %v1894 = vadd.f32 %v1893, %v1863
      %v1895 = vadd.f32 %v1894, %v1864
      %v1896 = vadd.f32 %v1895, %v1865
      %v1897 = vadd.f32 %v1896, %v1866
      %v1898 = vadd.f32 %v1897, %v1867
      %v1899 = vadd.f32 %v1898, %v1868
      %v1900 = vadd.f32 %v1899, %v1869
      %v1901 = vrot.slane %v1900, 4
      %v1902 = vadd.f32 %v1900, %v1901
      %v1903 = vrot.slane %v1902, 2
      %v1904 = vadd.f32 %v1902, %v1903
      %v1905 = vrot.slane %v1904, 1
      %v1906 = vadd.f32 %v1904, %v1905
      %v1907 = vmul.f32 %v1854, %v1854
      %v1908 = vmul.f32 %v1855, %v1855
      %v1909 = vmul.f32 %v1856, %v1856
      %v1910 = vmul.f32 %v1857, %v1857
      %v1911 = vmul.f32 %v1858, %v1858
      %v1912 = vmul.f32 %v1859, %v1859
      %v1913 = vmul.f32 %v1860, %v1860
      %v1914 = vmul.f32 %v1861, %v1861
      %v1915 = vmul.f32 %v1862, %v1862
      %v1916 = vmul.f32 %v1863, %v1863
      %v1917 = vmul.f32 %v1864, %v1864
      %v1918 = vmul.f32 %v1865, %v1865
      %v1919 = vmul.f32 %v1866, %v1866
      %v1920 = vmul.f32 %v1867, %v1867
      %v1921 = vmul.f32 %v1868, %v1868
      %v1922 = vmul.f32 %v1869, %v1869
      %v1923 = vadd.f32 %v1907, %v1908
      %v1924 = vadd.f32 %v1923, %v1909
      %v1925 = vadd.f32 %v1924, %v1910
      %v1926 = vadd.f32 %v1925, %v1911
      %v1927 = vadd.f32 %v1926, %v1912
      %v1928 = vadd.f32 %v1927, %v1913
      %v1929 = vadd.f32 %v1928, %v1914
      %v1930 = vadd.f32 %v1929, %v1915
      %v1931 = vadd.f32 %v1930, %v1916
      %v1932 = vadd.f32 %v1931, %v1917
      %v1933 = vadd.f32 %v1932, %v1918
      %v1934 = vadd.f32 %v1933, %v1919
      %v1935 = vadd.f32 %v1934, %v1920
      %v1936 = vadd.f32 %v1935, %v1921
      %v1937 = vadd.f32 %v1936, %v1922
      %v1938 = vrot.slane %v1937, 4
      %v1939 = vadd.f32 %v1937, %v1938
      %v1940 = vrot.slane %v1939, 2
      %v1941 = vadd.f32 %v1939, %v1940
      %v1942 = vrot.slane %v1941, 1
      %v1943 = vadd.f32 %v1941, %v1942
      %vm1944 = vcmask 1040384
      %v1945 = vsel %vm1944, %v1906, %v1943
      %v1946 = vsel %vm481, %v1945, 0.0
      %1947 = vst [vmem:[%s305] sm:$0xff] %v1946
      %s1948 = smul.u32 %s20, 2
      %s1949 = sadd.s32 %s1948, %s21
      %p1950 = scmp.lt.s32.totalorder %s1949, 3
      %s1951 = scalar_select %p1950, %s1949, 3
      %s1952 = smul.addr %s1951, 16
      %s1953 = smul.addr %s1952, 8
      %s1954 = scalar_lea.vmem %s3, %s1953
      %p1955 = scmp.lt.s32.totalorder %s20, 1
      %s1956 = scalar_select %p1955, %s20, 1
      %p1957 = scmp.lt.s32.totalorder %s21, 1
      %s1958 = scalar_select %p1957, %s21, 1
      %s1959 = smul.addr %s1956, 2
      %s1960 = sadd.s32 %s1958, %s1959
      %s1961 = smul.addr %s1960, 8
      %s1962 = scalar_lea.vmem %s4, %s1961
      // Predicated region
      $region33: #{base_conv_forward.2} parent=31 // pred_check
        %p1963 = pneg %p129
      $region34: #{base_conv_forward.2} parent=31 // pred_check_branch
        %1965 = sbr.rel (%p1963) target = $region36
      $region35: #{base_conv_forward.2} parent=31 // pred_region
        %s1966 = smul.u32 %s20, 2
        %s1967 = sadd.s32 %s1966, %s21
      $region36: #{base_conv_forward.2} parent=31 // pred_fallthru
        _
      // Predicated region
      $region37: #{base_conv_forward.2} parent=31 // pred_check
        %p1968 = pneg %p157
      $region38: #{base_conv_forward.2} parent=31 // pred_check_branch
        %1970 = sbr.rel (%p1968) target = $region40
      $region39: #{base_conv_forward.2} parent=31 // pred_region
        _
      $region40: #{base_conv_forward.2} parent=31 // pred_fallthru
        _
    $region32: #{base_conv_forward.2} parent=5 // pred_fallthru
      _
    %p1971 = scmp.le.s32.totalorder 2, %s11
    // Predicated region
    $region41: #{base_conv_forward.2} parent=5 // pred_check
      %p1972 = pneg %p1971
    $region42: #{base_conv_forward.2} parent=5 // pred_check_branch
      %1974 = sbr.rel (%p1972) target = $region44
    $region43: #{base_conv_forward.2} parent=5 // pred_region
      %s1975 = ssub.s32 %s11, 2
      // Predicated region
      $region45: #{base_conv_forward.2} parent=43 // pred_check
        %p1976 = pneg %p135
      $region46: #{base_conv_forward.2} parent=43 // pred_check_branch
        %1978 = sbr.rel (%p1976) target = $region48
      $region47: #{base_conv_forward.2} parent=43 // pred_region
        %s1979 = smul.u32 %s22, 2
        %s1980 = sadd.s32 %s1979, %s23
        %p1981 = scmp.lt.s32.totalorder %s1980, 3
        %s1982 = scalar_select %p1981, %s1980, 3
        %s1983 = smul.addr %s1982, 16
        %s1984 = smul.addr %s1983, 8
        %s1985 = scalar_lea.vmem %s3, %s1984
      $region48: #{base_conv_forward.2} parent=43 // pred_fallthru
        _
      // Predicated region
      $region49: #{base_conv_forward.2} parent=43 // pred_check
        %p1986 = pneg %p163
      $region50: #{base_conv_forward.2} parent=43 // pred_check_branch
        %1988 = sbr.rel (%p1986) target = $region52
      $region51: #{base_conv_forward.2} parent=43 // pred_region
        %p1989 = scmp.lt.s32.totalorder %s22, 1
        %s1990 = scalar_select %p1989, %s22, 1
        %p1991 = scmp.lt.s32.totalorder %s23, 1
        %s1992 = scalar_select %p1991, %s23, 1
        %s1993 = smul.addr %s1990, 2
        %s1994 = sadd.s32 %s1992, %s1993
        %s1995 = smul.addr %s1994, 8
        %s1996 = scalar_lea.vmem %s4, %s1995
      $region52: #{base_conv_forward.2} parent=43 // pred_fallthru
        _
    $region44: #{base_conv_forward.2} parent=5 // pred_fallthru
      _
  $region6: #{base_conv_forward.2} parent=0 // loop_footer
    %s15 = sadd.s32 1, %s11
  $region7: #{base_conv_forward.2} parent=0 // loop_footer_branch
    %10 = sbr.rel target = $region3
  $region8: #{base_conv_forward.2} parent=0 // loop_exit
    _

</llo_original>
